<compile_context>
chip_gen: v7x
topology: tpu7x:2x2x1
jax: 0.10.0
libtpu: 0.0.40
codegen_flags: <defaults>
</compile_context>

<pallas_src>
import functools

import numpy as np
import jax
import jax.numpy as jnp
from jax import lax
from jax.experimental import pallas as pl
from jax.experimental.pallas import tpu as pltpu


def _mha_kernel(x_ref, mem_ref, r_ref,
                wq_ref, wk_ref, wv_ref,
                u_ref, t_ref, wo_ref, gamma_ref, beta_ref,
                out_ref,
                hcat_ref, qu_ref, qt_ref, kp_ref, vp_ref, ctx_ref, shear_ref,
                *, num_heads, embed_dim):
    S, D = x_ref.shape
    M = mem_ref.shape[0]
    T = M + S
    H, E = num_heads, embed_dim

    x_f32 = x_ref[...]                                   # (S, D) f32, residual path
    x_bf = x_f32.astype(jnp.bfloat16)

    # h = cat((mem, x), dim=1) assembled in a bf16 VMEM scratch (mem pre-cast on host).
    hcat_ref[0:M, :] = mem_ref[...]
    hcat_ref[M:T, :] = x_bf
    h_bf = hcat_ref[...]                                 # (T, D) bf16

    # ---- packed projections: lane-dense 2D MXU matmuls, bf16 operands, f32 accum ----
    q = jnp.dot(x_bf, wq_ref[...], preferred_element_type=jnp.float32)   # (S, H*E)
    k = jnp.dot(h_bf, wk_ref[...], preferred_element_type=jnp.float32)   # (T, H*E)
    v = jnp.dot(h_bf, wv_ref[...], preferred_element_type=jnp.float32)   # (T, H*E)

    # u/t biases added once in packed form; stash bf16 copies in VMEM so the per-head
    # column windows below are plain static ref slices (no value reshape/relayout).
    qu_ref[...] = (q + u_ref[...]).astype(jnp.bfloat16)
    qt_ref[...] = (q + t_ref[...]).astype(jnp.bfloat16)
    kp_ref[...] = k.astype(jnp.bfloat16)
    vp_ref[...] = v.astype(jnp.bfloat16)

    # Mask / constants hoisted out of the head loop.
    row = lax.broadcasted_iota(jnp.int32, (S, T), 0)
    col = lax.broadcasted_iota(jnp.int32, (S, T), 1)
    keep = col <= row + M                                # tril(diagonal=M)
    inv_sqrt_e = 1.0 / (float(E) ** 0.5)
    dn_nt = (((1,), (1,)), ((), ()))                     # (S, E) x (T, E) -> (S, T)

    # ---- attention core, one head at a time (bounds the live score set to (S, T)) ----
    for h in range(H):
        c0 = h * E
        qu_h = qu_ref[:, c0:c0 + E]                      # (S, E) bf16
        qt_h = qt_ref[:, c0:c0 + E]                      # (S, E) bf16
        k_h = kp_ref[:, c0:c0 + E]                       # (T, E) bf16
        v_h = vp_ref[:, c0:c0 + E]                       # (T, E) bf16
        r_h = r_ref[:, c0:c0 + E]                        # (T, E) bf16 (precomputed)

        ac = lax.dot_general(qu_h, k_h, dn_nt, preferred_element_type=jnp.float32)
        bd = lax.dot_general(qt_h, r_h, dn_nt, preferred_element_type=jnp.float32)

        # Transformer-XL relative shift via a sheared VMEM scratch:
        #   bd_shift[i, j] = bd[i, j + S - 1 - i]
        # The scratch is reused across heads and never zero-initialised: any read
        # position this head does not write has j > i + M and is masked to -1e30 below,
        # so stale data never reaches the softmax (re-verify if the mask diagonal ever
        # changes).
        for i in range(S):                               # static unroll, S small
            shear_ref[i:i + 1, i:i + T] = bd[i:i + 1, :]
        bd_shift = shear_ref[:, S - 1:S - 1 + T]         # (S, T)

        # ---- fused mask + scale + softmax (EUP approximate reciprocal) ----
        att = jnp.where(keep, (ac + bd_shift) * inv_sqrt_e, -1e30)
        m = jnp.max(att, axis=-1, keepdims=True)
        p = jnp.exp(att - m)
        l = jnp.sum(p, axis=-1, keepdims=True)
        p = p * pl.reciprocal(l, approx=True)

        ctx = jnp.dot(p.astype(jnp.bfloat16), v_h,
                      preferred_element_type=jnp.float32)            # (S, E)
        ctx_ref[:, c0:c0 + E] = ctx.astype(jnp.bfloat16)             # packed layout

    # ---- packed output projection + dropout(identity) + residual + LayerNorm ----
    o = jnp.dot(ctx_ref[...], wo_ref[...], preferred_element_type=jnp.float32)  # (S, D)
    y = o + x_f32
    mu = jnp.mean(y, axis=-1, keepdims=True)
    var = jnp.mean(jnp.square(y - mu), axis=-1, keepdims=True)
    y_n = (y - mu) * lax.rsqrt(var + 1e-5)
    out_ref[...] = (y_n * gamma_ref[...] + beta_ref[...]).astype(out_ref.dtype)


def mha_forward(x, mem, R, wq, wk, wv, wr, u, t, wo, gamma, beta):
    B, S, D = x.shape
    M = mem.shape[1]
    T = M + S
    H, E = u.shape
    HE = H * E
    bf16 = jnp.bfloat16

    # Host-side, once per call: pre-cast constant operands to bf16 and hoist the
    # batch-invariant r projection out of the per-batch grid (same bf16-operand /
    # f32-accumulate arithmetic as the in-kernel matmuls).
    wq_bf = wq.astype(bf16)
    wk_bf = wk.astype(bf16)
    wv_bf = wv.astype(bf16)
    wo_bf = wo.astype(bf16)
    mem_bf = mem.astype(bf16)
    r_packed = jnp.dot(R[-T:].astype(bf16), wr.astype(bf16),
                       preferred_element_type=jnp.float32).astype(bf16)   # (T, H*E)
    u_flat = u.reshape(1, HE).astype(jnp.float32)
    t_flat = t.reshape(1, HE).astype(jnp.float32)

    kernel = functools.partial(_mha_kernel, num_heads=H, embed_dim=E)

    return pl.pallas_call(
        kernel,
        out_shape=jax.ShapeDtypeStruct((B, S, D), x.dtype),
        grid=(B,),
        in_specs=[
            pl.BlockSpec((None, S, D), lambda b: (b, 0, 0)),    # x (f32, residual)
            pl.BlockSpec((None, M, D), lambda b: (b, 0, 0)),    # mem (bf16)
            pl.BlockSpec((T, HE), lambda b: (0, 0)),            # r = R[-T:] @ Wr (bf16)
            pl.BlockSpec((D, HE), lambda b: (0, 0)),            # w_q packed (bf16)
            pl.BlockSpec((D, HE), lambda b: (0, 0)),            # w_k packed (bf16)
            pl.BlockSpec((D, HE), lambda b: (0, 0)),            # w_v packed (bf16)
            pl.BlockSpec((1, HE), lambda b: (0, 0)),            # u (f32)
            pl.BlockSpec((1, HE), lambda b: (0, 0)),            # t (f32)
            pl.BlockSpec((HE, D), lambda b: (0, 0)),            # mlp weight (bf16)
            pl.BlockSpec((1, D), lambda b: (0, 0)),             # layernorm gamma
            pl.BlockSpec((1, D), lambda b: (0, 0)),             # layernorm beta
        ],
        out_specs=pl.BlockSpec((None, S, D), lambda b: (b, 0, 0)),
        scratch_shapes=[
            pltpu.VMEM((T, D), bf16),              # h = cat(mem, x)
            pltpu.VMEM((S, HE), bf16),             # q + u (packed)
            pltpu.VMEM((S, HE), bf16),             # q + t (packed)
            pltpu.VMEM((T, HE), bf16),             # k (packed)
            pltpu.VMEM((T, HE), bf16),             # v (packed)
            pltpu.VMEM((S, HE), bf16),             # attention context (packed)
            pltpu.VMEM((S, T + S), jnp.float32),   # rel-shift shear buffer (per head)
        ],
        compiler_params=pltpu.CompilerParams(
            dimension_semantics=("parallel",)),
        # vmem_limit_bytes intentionally left at the default: the working set here is
        # <1 MiB; production tiles should re-derive it per generation (v7x: 64 MiB).
    )(x, mem_bf, r_packed, wq_bf, wk_bf, wv_bf, u_flat, t_flat, wo_bf, gamma, beta)


def mha_reference(x, mem, R, wq, wk, wv, wr, u, t, wo, gamma, beta,
                  matmul_dtype=jnp.float32):
    """Pure-JAX literal translation of the PyTorch forward (for verification).

    matmul_dtype=bfloat16 mimics the kernel's bf16-operand / f32-accumulate matmuls.
    """
    B, S, D = x.shape
    M = mem.shape[1]
    T = M + S
    H, E = u.shape
    f32 = jnp.float32
    c = lambda a: a.astype(matmul_dtype)

    h = jnp.concatenate([mem, x], axis=1)
    q = jnp.einsum('bsd,dn->bsn', c(x), c(wq),
                   preferred_element_type=f32).reshape(B, S, H, E).transpose(0, 2, 1, 3)
    k = jnp.einsum('btd,dn->btn', c(h), c(wk),
                   preferred_element_type=f32).reshape(B, T, H, E).transpose(0, 2, 1, 3)
    v = jnp.einsum('btd,dn->btn', c(h), c(wv),
                   preferred_element_type=f32).reshape(B, T, H, E).transpose(0, 2, 1, 3)
    r = jnp.einsum('td,dn->tn', c(R[-T:]), c(wr),
                   preferred_element_type=f32).reshape(T, H, E).transpose(1, 0, 2)
    qu = q + u[None, :, None, :]
    qt = q + t[None, :, None, :]
    ac = jnp.einsum('bhie,bhje->bhij', c(qu), c(k), preferred_element_type=f32)
    bd = jnp.einsum('bhie,hje->bhij', c(qt), c(r), preferred_element_type=f32)
    # circulant_shift: step-by-step translation of the torch index construction
    shift = -S + 1
    idx = np.roll(np.arange(T), shift)
    idx = idx[::-1]
    idx = np.tile(idx, 2)
    windows = np.stack([idx[s:s + T] for s in range(T + 1)])[:, ::-1]
    gidx = np.ascontiguousarray(windows[:S]).astype(np.int32)       # (S, T)
    gidx_b = jnp.broadcast_to(jnp.asarray(gidx)[None, None], (B, H, S, T))
    bd = jnp.take_along_axis(bd, gidx_b, axis=3)
    att = ac + bd
    keep = np.arange(T)[None, :] <= (np.arange(S)[:, None] + M)
    att = jnp.where(keep[None, None], att, 0.0) / (E ** 0.5)
    att = jnp.where(att == 0.0, -jnp.inf, att)
    att = att - jnp.max(att, axis=-1, keepdims=True)
    p = jnp.exp(att)
    p = p / jnp.sum(p, axis=-1, keepdims=True)
    ctx = jnp.einsum('bhij,bhje->bhie', c(p), c(v), preferred_element_type=f32)
    ctx = ctx.transpose(0, 2, 1, 3).reshape(B, S, H * E)
    out = jnp.einsum('bsn,nd->bsd', c(ctx), c(wo), preferred_element_type=f32)
    y = out + x
    mu = y.mean(-1, keepdims=True)
    var = ((y - mu) ** 2).mean(-1, keepdims=True)
    return (y - mu) / jnp.sqrt(var + 1e-5) * gamma[0] + beta[0]


if __name__ == "__main__":
    # model_dim=32, embed_dim=16, num_heads=2, mem_len=8, seg_len=8, batch=2
    B, S, M, D, H, E = 2, 8, 8, 32, 2, 16
    T = M + S
    key = jax.random.PRNGKey(0)
    ks = jax.random.split(key, 12)

    x = jax.random.normal(ks[0], (B, S, D), jnp.float32)
    mem = jax.random.normal(ks[1], (B, M, D), jnp.float32)
    R = jax.random.normal(ks[2], (T + 4, D), jnp.float32)     # positional encodings; last T used

    sc = 1.0 / (D ** 0.5)
    wq = jax.random.normal(ks[3], (D, H * E), jnp.float32) * sc
    wk = jax.random.normal(ks[4], (D, H * E), jnp.float32) * sc
    wv = jax.random.normal(ks[5], (D, H * E), jnp.float32) * sc
    wr = jax.random.normal(ks[6], (D, H * E), jnp.float32) * sc
    u = jax.random.normal(ks[7], (H, E), jnp.float32)          # torch.randn(1, H, 1, E)
    t = jax.random.normal(ks[8], (H, E), jnp.float32)
    wo = jax.random.normal(ks[9], (H * E, D), jnp.float32) * (1.0 / (H * E) ** 0.5)
    gamma = jnp.ones((1, D), jnp.float32)                      # nn.LayerNorm default init
    beta = jnp.zeros((1, D), jnp.float32)

    out = mha_forward(x, mem, R, wq, wk, wv, wr, u, t, wo, gamma, beta)
    out = jax.block_until_ready(out)
    assert out.shape == (B, S, D)
    assert bool(jnp.all(jnp.isfinite(out)))

    # Tight check vs a reference that uses the same bf16 MXU operands / f32 accumulation.
    ref_bf16 = mha_reference(x, mem, R, wq, wk, wv, wr, u, t, wo, gamma, beta,
                             matmul_dtype=jnp.bfloat16)
    err_bf16 = float(jnp.max(jnp.abs(out - ref_bf16)))
    assert err_bf16 < 2e-2, f"kernel vs bf16-operand reference max abs err {err_bf16}"

    # Loose check vs the full-f32 literal translation of the PyTorch module
    # (bf16 MXU operands give ~1e-2-level diffs, as expected).
    ref_f32 = mha_reference(x, mem, R, wq, wk, wv, wr, u, t, wo, gamma, beta,
                            matmul_dtype=jnp.float32)
    err_f32 = float(jnp.max(jnp.abs(out - ref_f32)))
    assert err_f32 < 1.5e-1, f"kernel vs f32 reference max abs err {err_f32}"

    print("KERNEL_OK")
</pallas_src>

<mosaic_0001>
module attributes {stable_mosaic.version = 11 : i64} {
  func.func @_mha_kernel(%arg0: i32, %arg1: memref<1x8x32xf32, #tpu.memory_space<vmem>>, %arg2: memref<1x8x32xbf16, #tpu.memory_space<vmem>>, %arg3: memref<16x32xbf16, #tpu.memory_space<vmem>>, %arg4: memref<32x32xbf16, #tpu.memory_space<vmem>>, %arg5: memref<32x32xbf16, #tpu.memory_space<vmem>>, %arg6: memref<32x32xbf16, #tpu.memory_space<vmem>>, %arg7: memref<1x32xf32, #tpu.memory_space<vmem>>, %arg8: memref<1x32xf32, #tpu.memory_space<vmem>>, %arg9: memref<32x32xbf16, #tpu.memory_space<vmem>>, %arg10: memref<1x32xf32, #tpu.memory_space<vmem>>, %arg11: memref<1x32xf32, #tpu.memory_space<vmem>>, %arg12: memref<1x8x32xf32, #tpu.memory_space<vmem>>, %arg13: memref<16x32xbf16, #tpu.memory_space<vmem>>, %arg14: memref<8x32xbf16, #tpu.memory_space<vmem>>, %arg15: memref<8x32xbf16, #tpu.memory_space<vmem>>, %arg16: memref<16x32xbf16, #tpu.memory_space<vmem>>, %arg17: memref<16x32xbf16, #tpu.memory_space<vmem>>, %arg18: memref<8x32xbf16, #tpu.memory_space<vmem>>, %arg19: memref<8x24xf32, #tpu.memory_space<vmem>>) attributes {dimension_semantics = [#tpu.dimension_semantics<parallel>], iteration_bounds = array<i64: 2>, scalar_prefetch = 0 : i64, scratch_operands = 7 : i64, tpu.core_type = #tpu.core_type<tc>, window_params = [{transform_indices = @transform_0, window_bounds = array<i64: 1, 8, 32>}, {transform_indices = @transform_1, window_bounds = array<i64: 1, 8, 32>}, {pipeline_mode = #tpu.pipeline_mode<synchronous>, transform_indices = @transform_2, window_bounds = array<i64: 16, 32>}, {pipeline_mode = #tpu.pipeline_mode<synchronous>, transform_indices = @transform_3, window_bounds = array<i64: 32, 32>}, {pipeline_mode = #tpu.pipeline_mode<synchronous>, transform_indices = @transform_4, window_bounds = array<i64: 32, 32>}, {pipeline_mode = #tpu.pipeline_mode<synchronous>, transform_indices = @transform_5, window_bounds = array<i64: 32, 32>}, {pipeline_mode = #tpu.pipeline_mode<synchronous>, transform_indices = @transform_6, window_bounds = array<i64: 1, 32>}, {pipeline_mode = #tpu.pipeline_mode<synchronous>, transform_indices = @transform_7, window_bounds = array<i64: 1, 32>}, {pipeline_mode = #tpu.pipeline_mode<synchronous>, transform_indices = @transform_8, window_bounds = array<i64: 32, 32>}, {pipeline_mode = #tpu.pipeline_mode<synchronous>, transform_indices = @transform_9, window_bounds = array<i64: 1, 32>}, {pipeline_mode = #tpu.pipeline_mode<synchronous>, transform_indices = @transform_10, window_bounds = array<i64: 1, 32>}, {transform_indices = @transform_11, window_bounds = array<i64: 1, 8, 32>}]} {
    %c0 = arith.constant 0 : index
    %c0_0 = arith.constant 0 : index
    %c0_1 = arith.constant 0 : index
    %0 = vector.load %arg1[%c0, %c0_0, %c0_1] : memref<1x8x32xf32, #tpu.memory_space<vmem>>, vector<1x8x32xf32>
    %1 = vector.shape_cast %0 : vector<1x8x32xf32> to vector<8x32xf32>
    %2 = arith.truncf %1 : vector<8x32xf32> to vector<8x32xbf16>
    %c0_2 = arith.constant 0 : index
    %c0_3 = arith.constant 0 : index
    %c0_4 = arith.constant 0 : index
    %3 = vector.load %arg2[%c0_2, %c0_3, %c0_4] : memref<1x8x32xbf16, #tpu.memory_space<vmem>>, vector<1x8x32xbf16>
    %4 = vector.shape_cast %3 : vector<1x8x32xbf16> to vector<8x32xbf16>
    %c0_5 = arith.constant 0 : index
    %c0_6 = arith.constant 0 : index
    %5 = vector.load %arg13[%c0_5, %c0_6] : memref<16x32xbf16, #tpu.memory_space<vmem>>, vector<8x32xbf16>
    tpu.vector_store %arg13[%c0_5, %c0_6], %4 {strides = array<i32>} : memref<16x32xbf16, #tpu.memory_space<vmem>>, vector<8x32xbf16>,
    %c8 = arith.constant 8 : index
    %c0_7 = arith.constant 0 : index
    %6 = vector.load %arg13[%c8, %c0_7] : memref<16x32xbf16, #tpu.memory_space<vmem>>, vector<8x32xbf16>
    tpu.vector_store %arg13[%c8, %c0_7], %2 {strides = array<i32>} : memref<16x32xbf16, #tpu.memory_space<vmem>>, vector<8x32xbf16>,
    %c0_8 = arith.constant 0 : index
    %c0_9 = arith.constant 0 : index
    %7 = vector.load %arg13[%c0_8, %c0_9] : memref<16x32xbf16, #tpu.memory_space<vmem>>, vector<16x32xbf16>
    %c0_10 = arith.constant 0 : index
    %c0_11 = arith.constant 0 : index
    %8 = vector.load %arg4[%c0_10, %c0_11] : memref<32x32xbf16, #tpu.memory_space<vmem>>, vector<32x32xbf16>
    %cst = arith.constant dense<0.000000e+00> : vector<8x32xf32>
    %9 = tpu.matmul %2, %8, %cst {dimension_numbers = #tpu.dot_dimension_numbers<[1], [0], [0], [1], [0, 0, 1, 1], [], []>} : vector<8x32xbf16>, vector<32x32xbf16>, vector<8x32xf32> -> vector<8x32xf32>
    %c0_12 = arith.constant 0 : index
    %c0_13 = arith.constant 0 : index
    %10 = vector.load %arg5[%c0_12, %c0_13] : memref<32x32xbf16, #tpu.memory_space<vmem>>, vector<32x32xbf16>
    %cst_14 = arith.constant dense<0.000000e+00> : vector<16x32xf32>
    %11 = tpu.matmul %7, %10, %cst_14 {dimension_numbers = #tpu.dot_dimension_numbers<[1], [0], [0], [1], [0, 0, 1, 1], [], []>} : vector<16x32xbf16>, vector<32x32xbf16>, vector<16x32xf32> -> vector<16x32xf32>
    %c0_15 = arith.constant 0 : index
    %c0_16 = arith.constant 0 : index
    %12 = vector.load %arg6[%c0_15, %c0_16] : memref<32x32xbf16, #tpu.memory_space<vmem>>, vector<32x32xbf16>
    %cst_17 = arith.constant dense<0.000000e+00> : vector<16x32xf32>
    %13 = tpu.matmul %7, %12, %cst_17 {dimension_numbers = #tpu.dot_dimension_numbers<[1], [0], [0], [1], [0, 0, 1, 1], [], []>} : vector<16x32xbf16>, vector<32x32xbf16>, vector<16x32xf32> -> vector<16x32xf32>
    %c0_18 = arith.constant 0 : index
    %c0_19 = arith.constant 0 : index
    %14 = vector.load %arg7[%c0_18, %c0_19] : memref<1x32xf32, #tpu.memory_space<vmem>>, vector<1x32xf32>
    %15 = vector.broadcast %14 : vector<1x32xf32> to vector<8x32xf32>
    %16 = arith.addf %9, %15 : vector<8x32xf32>
    %17 = arith.truncf %16 : vector<8x32xf32> to vector<8x32xbf16>
    %c0_20 = arith.constant 0 : index
    %c0_21 = arith.constant 0 : index
    %18 = vector.load %arg14[%c0_20, %c0_21] : memref<8x32xbf16, #tpu.memory_space<vmem>>, vector<8x32xbf16>
    tpu.vector_store %arg14[%c0_20, %c0_21], %17 {strides = array<i32>} : memref<8x32xbf16, #tpu.memory_space<vmem>>, vector<8x32xbf16>,
    %c0_22 = arith.constant 0 : index
    %c0_23 = arith.constant 0 : index
    %19 = vector.load %arg8[%c0_22, %c0_23] : memref<1x32xf32, #tpu.memory_space<vmem>>, vector<1x32xf32>
    %20 = vector.broadcast %19 : vector<1x32xf32> to vector<8x32xf32>
    %21 = arith.addf %9, %20 : vector<8x32xf32>
    %22 = arith.truncf %21 : vector<8x32xf32> to vector<8x32xbf16>
    %c0_24 = arith.constant 0 : index
    %c0_25 = arith.constant 0 : index
    %23 = vector.load %arg15[%c0_24, %c0_25] : memref<8x32xbf16, #tpu.memory_space<vmem>>, vector<8x32xbf16>
    tpu.vector_store %arg15[%c0_24, %c0_25], %22 {strides = array<i32>} : memref<8x32xbf16, #tpu.memory_space<vmem>>, vector<8x32xbf16>,
    %24 = arith.truncf %11 : vector<16x32xf32> to vector<16x32xbf16>
    %c0_26 = arith.constant 0 : index
    %c0_27 = arith.constant 0 : index
    %25 = vector.load %arg16[%c0_26, %c0_27] : memref<16x32xbf16, #tpu.memory_space<vmem>>, vector<16x32xbf16>
    tpu.vector_store %arg16[%c0_26, %c0_27], %24 {strides = array<i32>} : memref<16x32xbf16, #tpu.memory_space<vmem>>, vector<16x32xbf16>,
    %26 = arith.truncf %13 : vector<16x32xf32> to vector<16x32xbf16>
    %c0_28 = arith.constant 0 : index
    %c0_29 = arith.constant 0 : index
    %27 = vector.load %arg17[%c0_28, %c0_29] : memref<16x32xbf16, #tpu.memory_space<vmem>>, vector<16x32xbf16>
    tpu.vector_store %arg17[%c0_28, %c0_29], %26 {strides = array<i32>} : memref<16x32xbf16, #tpu.memory_space<vmem>>, vector<16x32xbf16>,
    %28 = tpu.iota {dimensions = array<i32: 0>} : vector<8x16xi32>
    %29 = tpu.iota {dimensions = array<i32: 1>} : vector<8x16xi32>
    %c8_i32 = arith.constant 8 : i32
    %30 = vector.broadcast %c8_i32 : i32 to vector<8x16xi32>
    %31 = arith.addi %28, %30 : vector<8x16xi32>
    %32 = arith.cmpi sle, %29, %31 : vector<8x16xi32>
    %c0_30 = arith.constant 0 : index
    %c0_31 = arith.constant 0 : index
    %33 = vector.load %arg14[%c0_30, %c0_31] : memref<8x32xbf16, #tpu.memory_space<vmem>>, vector<8x16xbf16>
    %c0_32 = arith.constant 0 : index
    %c0_33 = arith.constant 0 : index
    %34 = vector.load %arg15[%c0_32, %c0_33] : memref<8x32xbf16, #tpu.memory_space<vmem>>, vector<8x16xbf16>
    %c0_34 = arith.constant 0 : index
    %c0_35 = arith.constant 0 : index
    %35 = vector.load %arg16[%c0_34, %c0_35] : memref<16x32xbf16, #tpu.memory_space<vmem>>, vector<16x16xbf16>
    %c0_36 = arith.constant 0 : index
    %c0_37 = arith.constant 0 : index
    %36 = vector.load %arg17[%c0_36, %c0_37] : memref<16x32xbf16, #tpu.memory_space<vmem>>, vector<16x16xbf16>
    %c0_38 = arith.constant 0 : index
    %c0_39 = arith.constant 0 : index
    %37 = vector.load %arg3[%c0_38, %c0_39] : memref<16x32xbf16, #tpu.memory_space<vmem>>, vector<16x16xbf16>
    %cst_40 = arith.constant dense<0.000000e+00> : vector<8x16xf32>
    %38 = tpu.matmul %33, %35, %cst_40 {dimension_numbers = #tpu.dot_dimension_numbers<[1], [1], [0], [0], [0, 0, 1, 0], [], []>} : vector<8x16xbf16>, vector<16x16xbf16>, vector<8x16xf32> -> vector<8x16xf32>
    %cst_41 = arith.constant dense<0.000000e+00> : vector<8x16xf32>
    %39 = tpu.matmul %34, %37, %cst_41 {dimension_numbers = #tpu.dot_dimension_numbers<[1], [1], [0], [0], [0, 0, 1, 0], [], []>} : vector<8x16xbf16>, vector<16x16xbf16>, vector<8x16xf32> -> vector<8x16xf32>
    %40 = vector.extract_strided_slice %39 {offsets = [0, 0], sizes = [1, 16], strides = [1, 1]} : vector<8x16xf32> to vector<1x16xf32>
    %c0_42 = arith.constant 0 : index
    %c0_43 = arith.constant 0 : index
    %41 = vector.load %arg19[%c0_42, %c0_43] : memref<8x24xf32, #tpu.memory_space<vmem>>, vector<1x16xf32>
    tpu.vector_store %arg19[%c0_42, %c0_43], %40 {strides = array<i32>} : memref<8x24xf32, #tpu.memory_space<vmem>>, vector<1x16xf32>,
    %42 = vector.extract_strided_slice %39 {offsets = [1, 0], sizes = [1, 16], strides = [1, 1]} : vector<8x16xf32> to vector<1x16xf32>
    %c1 = arith.constant 1 : index
    %c1_44 = arith.constant 1 : index
    %43 = vector.load %arg19[%c1, %c1_44] : memref<8x24xf32, #tpu.memory_space<vmem>>, vector<1x16xf32>
    tpu.vector_store %arg19[%c1, %c1_44], %42 {strides = array<i32>} : memref<8x24xf32, #tpu.memory_space<vmem>>, vector<1x16xf32>,
    %44 = vector.extract_strided_slice %39 {offsets = [2, 0], sizes = [1, 16], strides = [1, 1]} : vector<8x16xf32> to vector<1x16xf32>
    %c2 = arith.constant 2 : index
    %c2_45 = arith.constant 2 : index
    %45 = vector.load %arg19[%c2, %c2_45] : memref<8x24xf32, #tpu.memory_space<vmem>>, vector<1x16xf32>
    tpu.vector_store %arg19[%c2, %c2_45], %44 {strides = array<i32>} : memref<8x24xf32, #tpu.memory_space<vmem>>, vector<1x16xf32>,
    %46 = vector.extract_strided_slice %39 {offsets = [3, 0], sizes = [1, 16], strides = [1, 1]} : vector<8x16xf32> to vector<1x16xf32>
    %c3 = arith.constant 3 : index
    %c3_46 = arith.constant 3 : index
    %47 = vector.load %arg19[%c3, %c3_46] : memref<8x24xf32, #tpu.memory_space<vmem>>, vector<1x16xf32>
    tpu.vector_store %arg19[%c3, %c3_46], %46 {strides = array<i32>} : memref<8x24xf32, #tpu.memory_space<vmem>>, vector<1x16xf32>,
    %48 = vector.extract_strided_slice %39 {offsets = [4, 0], sizes = [1, 16], strides = [1, 1]} : vector<8x16xf32> to vector<1x16xf32>
    %c4 = arith.constant 4 : index
    %c4_47 = arith.constant 4 : index
    %49 = vector.load %arg19[%c4, %c4_47] : memref<8x24xf32, #tpu.memory_space<vmem>>, vector<1x16xf32>
    tpu.vector_store %arg19[%c4, %c4_47], %48 {strides = array<i32>} : memref<8x24xf32, #tpu.memory_space<vmem>>, vector<1x16xf32>,
    %50 = vector.extract_strided_slice %39 {offsets = [5, 0], sizes = [1, 16], strides = [1, 1]} : vector<8x16xf32> to vector<1x16xf32>
    %c5 = arith.constant 5 : index
    %c5_48 = arith.constant 5 : index
    %51 = vector.load %arg19[%c5, %c5_48] : memref<8x24xf32, #tpu.memory_space<vmem>>, vector<1x16xf32>
    tpu.vector_store %arg19[%c5, %c5_48], %50 {strides = array<i32>} : memref<8x24xf32, #tpu.memory_space<vmem>>, vector<1x16xf32>,
    %52 = vector.extract_strided_slice %39 {offsets = [6, 0], sizes = [1, 16], strides = [1, 1]} : vector<8x16xf32> to vector<1x16xf32>
    %c6 = arith.constant 6 : index
    %c6_49 = arith.constant 6 : index
    %53 = vector.load %arg19[%c6, %c6_49] : memref<8x24xf32, #tpu.memory_space<vmem>>, vector<1x16xf32>
    tpu.vector_store %arg19[%c6, %c6_49], %52 {strides = array<i32>} : memref<8x24xf32, #tpu.memory_space<vmem>>, vector<1x16xf32>,
    %54 = vector.extract_strided_slice %39 {offsets = [7, 0], sizes = [1, 16], strides = [1, 1]} : vector<8x16xf32> to vector<1x16xf32>
    %c7 = arith.constant 7 : index
    %c7_50 = arith.constant 7 : index
    %55 = vector.load %arg19[%c7, %c7_50] : memref<8x24xf32, #tpu.memory_space<vmem>>, vector<1x16xf32>
    tpu.vector_store %arg19[%c7, %c7_50], %54 {strides = array<i32>} : memref<8x24xf32, #tpu.memory_space<vmem>>, vector<1x16xf32>,
    %c0_51 = arith.constant 0 : index
    %c7_52 = arith.constant 7 : index
    %56 = vector.load %arg19[%c0_51, %c7_52] : memref<8x24xf32, #tpu.memory_space<vmem>>, vector<8x16xf32>
    %57 = arith.addf %38, %56 : vector<8x16xf32>
    %cst_53 = arith.constant 2.500000e-01 : f32
    %58 = vector.broadcast %cst_53 : f32 to vector<8x16xf32>
    %59 = arith.mulf %57, %58 : vector<8x16xf32>
    %cst_54 = arith.constant -1.000000e+30 : f32
    %60 = vector.broadcast %cst_54 : f32 to vector<8x16xf32>
    %61 = arith.select %32, %59, %60 : vector<8x16xi1>, vector<8x16xf32>
    %cst_55 = arith.constant dense<0xFF800000> : vector<8xf32>
    %62 = vector.multi_reduction <maximumf>, %61, %cst_55 [1] : vector<8x16xf32> to vector<8xf32>
    %63 = vector.shape_cast %62 : vector<8xf32> to vector<8x1xf32>
    %64 = vector.broadcast %63 : vector<8x1xf32> to vector<8x16xf32>
    %65 = arith.subf %61, %64 : vector<8x16xf32>
    %66 = math.exp %65 : vector<8x16xf32>
    %cst_56 = arith.constant dense<0.000000e+00> : vector<8xf32>
    %67 = vector.multi_reduction <add>, %66, %cst_56 [1] : vector<8x16xf32> to vector<8xf32>
    %68 = vector.shape_cast %67 : vector<8xf32> to vector<8x1xf32>
    %69 = tpu.reciprocal %68 {approx = true} : vector<8x1xf32> -> vector<8x1xf32>
    %70 = vector.broadcast %69 : vector<8x1xf32> to vector<8x16xf32>
    %71 = arith.mulf %66, %70 : vector<8x16xf32>
    %72 = arith.truncf %71 : vector<8x16xf32> to vector<8x16xbf16>
    %cst_57 = arith.constant dense<0.000000e+00> : vector<8x16xf32>
    %73 = tpu.matmul %72, %36, %cst_57 {dimension_numbers = #tpu.dot_dimension_numbers<[1], [0], [0], [1], [0, 0, 1, 1], [], []>} : vector<8x16xbf16>, vector<16x16xbf16>, vector<8x16xf32> -> vector<8x16xf32>
    %74 = arith.truncf %73 : vector<8x16xf32> to vector<8x16xbf16>
    %c0_58 = arith.constant 0 : index
    %c0_59 = arith.constant 0 : index
    %75 = vector.load %arg18[%c0_58, %c0_59] : memref<8x32xbf16, #tpu.memory_space<vmem>>, vector<8x16xbf16>
    tpu.vector_store %arg18[%c0_58, %c0_59], %74 {strides = array<i32>} : memref<8x32xbf16, #tpu.memory_space<vmem>>, vector<8x16xbf16>,
    %c0_60 = arith.constant 0 : index
    %c16 = arith.constant 16 : index
    %76 = vector.load %arg14[%c0_60, %c16] : memref<8x32xbf16, #tpu.memory_space<vmem>>, vector<8x16xbf16>
    %c0_61 = arith.constant 0 : index
    %c16_62 = arith.constant 16 : index
    %77 = vector.load %arg15[%c0_61, %c16_62] : memref<8x32xbf16, #tpu.memory_space<vmem>>, vector<8x16xbf16>
    %c0_63 = arith.constant 0 : index
    %c16_64 = arith.constant 16 : index
    %78 = vector.load %arg16[%c0_63, %c16_64] : memref<16x32xbf16, #tpu.memory_space<vmem>>, vector<16x16xbf16>
    %c0_65 = arith.constant 0 : index
    %c16_66 = arith.constant 16 : index
    %79 = vector.load %arg17[%c0_65, %c16_66] : memref<16x32xbf16, #tpu.memory_space<vmem>>, vector<16x16xbf16>
    %c0_67 = arith.constant 0 : index
    %c16_68 = arith.constant 16 : index
    %80 = vector.load %arg3[%c0_67, %c16_68] : memref<16x32xbf16, #tpu.memory_space<vmem>>, vector<16x16xbf16>
    %cst_69 = arith.constant dense<0.000000e+00> : vector<8x16xf32>
    %81 = tpu.matmul %76, %78, %cst_69 {dimension_numbers = #tpu.dot_dimension_numbers<[1], [1], [0], [0], [0, 0, 1, 0], [], []>} : vector<8x16xbf16>, vector<16x16xbf16>, vector<8x16xf32> -> vector<8x16xf32>
    %cst_70 = arith.constant dense<0.000000e+00> : vector<8x16xf32>
    %82 = tpu.matmul %77, %80, %cst_70 {dimension_numbers = #tpu.dot_dimension_numbers<[1], [1], [0], [0], [0, 0, 1, 0], [], []>} : vector<8x16xbf16>, vector<16x16xbf16>, vector<8x16xf32> -> vector<8x16xf32>
    %83 = vector.extract_strided_slice %82 {offsets = [0, 0], sizes = [1, 16], strides = [1, 1]} : vector<8x16xf32> to vector<1x16xf32>
    %c0_71 = arith.constant 0 : index
    %c0_72 = arith.constant 0 : index
    %84 = vector.load %arg19[%c0_71, %c0_72] : memref<8x24xf32, #tpu.memory_space<vmem>>, vector<1x16xf32>
    tpu.vector_store %arg19[%c0_71, %c0_72], %83 {strides = array<i32>} : memref<8x24xf32, #tpu.memory_space<vmem>>, vector<1x16xf32>,
    %85 = vector.extract_strided_slice %82 {offsets = [1, 0], sizes = [1, 16], strides = [1, 1]} : vector<8x16xf32> to vector<1x16xf32>
    %c1_73 = arith.constant 1 : index
    %c1_74 = arith.constant 1 : index
    %86 = vector.load %arg19[%c1_73, %c1_74] : memref<8x24xf32, #tpu.memory_space<vmem>>, vector<1x16xf32>
    tpu.vector_store %arg19[%c1_73, %c1_74], %85 {strides = array<i32>} : memref<8x24xf32, #tpu.memory_space<vmem>>, vector<1x16xf32>,
    %87 = vector.extract_strided_slice %82 {offsets = [2, 0], sizes = [1, 16], strides = [1, 1]} : vector<8x16xf32> to vector<1x16xf32>
    %c2_75 = arith.constant 2 : index
    %c2_76 = arith.constant 2 : index
    %88 = vector.load %arg19[%c2_75, %c2_76] : memref<8x24xf32, #tpu.memory_space<vmem>>, vector<1x16xf32>
    tpu.vector_store %arg19[%c2_75, %c2_76], %87 {strides = array<i32>} : memref<8x24xf32, #tpu.memory_space<vmem>>, vector<1x16xf32>,
    %89 = vector.extract_strided_slice %82 {offsets = [3, 0], sizes = [1, 16], strides = [1, 1]} : vector<8x16xf32> to vector<1x16xf32>
    %c3_77 = arith.constant 3 : index
    %c3_78 = arith.constant 3 : index
    %90 = vector.load %arg19[%c3_77, %c3_78] : memref<8x24xf32, #tpu.memory_space<vmem>>, vector<1x16xf32>
    tpu.vector_store %arg19[%c3_77, %c3_78], %89 {strides = array<i32>} : memref<8x24xf32, #tpu.memory_space<vmem>>, vector<1x16xf32>,
    %91 = vector.extract_strided_slice %82 {offsets = [4, 0], sizes = [1, 16], strides = [1, 1]} : vector<8x16xf32> to vector<1x16xf32>
    %c4_79 = arith.constant 4 : index
    %c4_80 = arith.constant 4 : index
    %92 = vector.load %arg19[%c4_79, %c4_80] : memref<8x24xf32, #tpu.memory_space<vmem>>, vector<1x16xf32>
    tpu.vector_store %arg19[%c4_79, %c4_80], %91 {strides = array<i32>} : memref<8x24xf32, #tpu.memory_space<vmem>>, vector<1x16xf32>,
    %93 = vector.extract_strided_slice %82 {offsets = [5, 0], sizes = [1, 16], strides = [1, 1]} : vector<8x16xf32> to vector<1x16xf32>
    %c5_81 = arith.constant 5 : index
    %c5_82 = arith.constant 5 : index
    %94 = vector.load %arg19[%c5_81, %c5_82] : memref<8x24xf32, #tpu.memory_space<vmem>>, vector<1x16xf32>
    tpu.vector_store %arg19[%c5_81, %c5_82], %93 {strides = array<i32>} : memref<8x24xf32, #tpu.memory_space<vmem>>, vector<1x16xf32>,
    %95 = vector.extract_strided_slice %82 {offsets = [6, 0], sizes = [1, 16], strides = [1, 1]} : vector<8x16xf32> to vector<1x16xf32>
    %c6_83 = arith.constant 6 : index
    %c6_84 = arith.constant 6 : index
    %96 = vector.load %arg19[%c6_83, %c6_84] : memref<8x24xf32, #tpu.memory_space<vmem>>, vector<1x16xf32>
    tpu.vector_store %arg19[%c6_83, %c6_84], %95 {strides = array<i32>} : memref<8x24xf32, #tpu.memory_space<vmem>>, vector<1x16xf32>,
    %97 = vector.extract_strided_slice %82 {offsets = [7, 0], sizes = [1, 16], strides = [1, 1]} : vector<8x16xf32> to vector<1x16xf32>
    %c7_85 = arith.constant 7 : index
    %c7_86 = arith.constant 7 : index
    %98 = vector.load %arg19[%c7_85, %c7_86] : memref<8x24xf32, #tpu.memory_space<vmem>>, vector<1x16xf32>
    tpu.vector_store %arg19[%c7_85, %c7_86], %97 {strides = array<i32>} : memref<8x24xf32, #tpu.memory_space<vmem>>, vector<1x16xf32>,
    %c0_87 = arith.constant 0 : index
    %c7_88 = arith.constant 7 : index
    %99 = vector.load %arg19[%c0_87, %c7_88] : memref<8x24xf32, #tpu.memory_space<vmem>>, vector<8x16xf32>
    %100 = arith.addf %81, %99 : vector<8x16xf32>
    %cst_89 = arith.constant 2.500000e-01 : f32
    %101 = vector.broadcast %cst_89 : f32 to vector<8x16xf32>
    %102 = arith.mulf %100, %101 : vector<8x16xf32>
    %cst_90 = arith.constant -1.000000e+30 : f32
    %103 = vector.broadcast %cst_90 : f32 to vector<8x16xf32>
    %104 = arith.select %32, %102, %103 : vector<8x16xi1>, vector<8x16xf32>
    %cst_91 = arith.constant dense<0xFF800000> : vector<8xf32>
    %105 = vector.multi_reduction <maximumf>, %104, %cst_91 [1] : vector<8x16xf32> to vector<8xf32>
    %106 = vector.shape_cast %105 : vector<8xf32> to vector<8x1xf32>
    %107 = vector.broadcast %106 : vector<8x1xf32> to vector<8x16xf32>
    %108 = arith.subf %104, %107 : vector<8x16xf32>
    %109 = math.exp %108 : vector<8x16xf32>
    %cst_92 = arith.constant dense<0.000000e+00> : vector<8xf32>
    %110 = vector.multi_reduction <add>, %109, %cst_92 [1] : vector<8x16xf32> to vector<8xf32>
    %111 = vector.shape_cast %110 : vector<8xf32> to vector<8x1xf32>
    %112 = tpu.reciprocal %111 {approx = true} : vector<8x1xf32> -> vector<8x1xf32>
    %113 = vector.broadcast %112 : vector<8x1xf32> to vector<8x16xf32>
    %114 = arith.mulf %109, %113 : vector<8x16xf32>
    %115 = arith.truncf %114 : vector<8x16xf32> to vector<8x16xbf16>
    %cst_93 = arith.constant dense<0.000000e+00> : vector<8x16xf32>
    %116 = tpu.matmul %115, %79, %cst_93 {dimension_numbers = #tpu.dot_dimension_numbers<[1], [0], [0], [1], [0, 0, 1, 1], [], []>} : vector<8x16xbf16>, vector<16x16xbf16>, vector<8x16xf32> -> vector<8x16xf32>
    %117 = arith.truncf %116 : vector<8x16xf32> to vector<8x16xbf16>
    %c0_94 = arith.constant 0 : index
    %c16_95 = arith.constant 16 : index
    %118 = vector.load %arg18[%c0_94, %c16_95] : memref<8x32xbf16, #tpu.memory_space<vmem>>, vector<8x16xbf16>
    tpu.vector_store %arg18[%c0_94, %c16_95], %117 {strides = array<i32>} : memref<8x32xbf16, #tpu.memory_space<vmem>>, vector<8x16xbf16>,
    %c0_96 = arith.constant 0 : index
    %c0_97 = arith.constant 0 : index
    %119 = vector.load %arg18[%c0_96, %c0_97] : memref<8x32xbf16, #tpu.memory_space<vmem>>, vector<8x32xbf16>
    %c0_98 = arith.constant 0 : index
    %c0_99 = arith.constant 0 : index
    %120 = vector.load %arg9[%c0_98, %c0_99] : memref<32x32xbf16, #tpu.memory_space<vmem>>, vector<32x32xbf16>
    %cst_100 = arith.constant dense<0.000000e+00> : vector<8x32xf32>
    %121 = tpu.matmul %119, %120, %cst_100 {dimension_numbers = #tpu.dot_dimension_numbers<[1], [0], [0], [1], [0, 0, 1, 1], [], []>} : vector<8x32xbf16>, vector<32x32xbf16>, vector<8x32xf32> -> vector<8x32xf32>
    %122 = arith.addf %121, %1 : vector<8x32xf32>
    %cst_101 = arith.constant dense<0.000000e+00> : vector<8xf32>
    %123 = vector.multi_reduction <add>, %122, %cst_101 [1] : vector<8x32xf32> to vector<8xf32>
    %124 = vector.shape_cast %123 : vector<8xf32> to vector<8x1xf32>
    %cst_102 = arith.constant 3.200000e+01 : f32
    %125 = vector.broadcast %cst_102 : f32 to vector<8x1xf32>
    %126 = arith.divf %124, %125 : vector<8x1xf32>
    %127 = vector.broadcast %126 : vector<8x1xf32> to vector<8x32xf32>
    %128 = arith.subf %122, %127 : vector<8x32xf32>
    %129 = arith.mulf %128, %128 : vector<8x32xf32>
    %cst_103 = arith.constant dense<0.000000e+00> : vector<8xf32>
    %130 = vector.multi_reduction <add>, %129, %cst_103 [1] : vector<8x32xf32> to vector<8xf32>
    %131 = vector.shape_cast %130 : vector<8xf32> to vector<8x1xf32>
    %cst_104 = arith.constant 3.200000e+01 : f32
    %132 = vector.broadcast %cst_104 : f32 to vector<8x1xf32>
    %133 = arith.divf %131, %132 : vector<8x1xf32>
    %134 = vector.broadcast %126 : vector<8x1xf32> to vector<8x32xf32>
    %135 = arith.subf %122, %134 : vector<8x32xf32>
    %cst_105 = arith.constant 9.99999974E-6 : f32
    %136 = vector.broadcast %cst_105 : f32 to vector<8x1xf32>
    %137 = arith.addf %133, %136 : vector<8x1xf32>
    %138 = math.rsqrt %137 : vector<8x1xf32>
    %139 = vector.broadcast %138 : vector<8x1xf32> to vector<8x32xf32>
    %140 = arith.mulf %135, %139 : vector<8x32xf32>
    %c0_106 = arith.constant 0 : index
    %c0_107 = arith.constant 0 : index
    %141 = vector.load %arg10[%c0_106, %c0_107] : memref<1x32xf32, #tpu.memory_space<vmem>>, vector<1x32xf32>
    %142 = vector.broadcast %141 : vector<1x32xf32> to vector<8x32xf32>
    %143 = arith.mulf %140, %142 : vector<8x32xf32>
    %c0_108 = arith.constant 0 : index
    %c0_109 = arith.constant 0 : index
    %144 = vector.load %arg11[%c0_108, %c0_109] : memref<1x32xf32, #tpu.memory_space<vmem>>, vector<1x32xf32>
    %145 = vector.broadcast %144 : vector<1x32xf32> to vector<8x32xf32>
    %146 = arith.addf %143, %145 : vector<8x32xf32>
    %c0_110 = arith.constant 0 : index
    %c0_111 = arith.constant 0 : index
    %c0_112 = arith.constant 0 : index
    %147 = vector.load %arg12[%c0_110, %c0_111, %c0_112] : memref<1x8x32xf32, #tpu.memory_space<vmem>>, vector<1x8x32xf32>
    %148 = vector.shape_cast %147 : vector<1x8x32xf32> to vector<8x32xf32>
    %149 = vector.shape_cast %146 : vector<8x32xf32> to vector<1x8x32xf32>
    tpu.vector_store %arg12[%c0_110, %c0_111, %c0_112], %149 {strides = array<i32>} : memref<1x8x32xf32, #tpu.memory_space<vmem>>, vector<1x8x32xf32>,
    return
  }
  func.func @transform_0(%arg0: i32) -> (i32, i32, i32) {
    %c0_i32 = arith.constant 0 : i32
    %c0_i32_0 = arith.constant 0 : i32
    %c0_i32_1 = arith.constant 0 : i32
    return %arg0, %c0_i32, %c0_i32_0 : i32, i32, i32
  }
  func.func @transform_1(%arg0: i32) -> (i32, i32, i32) {
    %c0_i32 = arith.constant 0 : i32
    %c0_i32_0 = arith.constant 0 : i32
    %c0_i32_1 = arith.constant 0 : i32
    return %arg0, %c0_i32, %c0_i32_0 : i32, i32, i32
  }
  func.func @transform_2(%arg0: i32) -> (i32, i32) {
    %c0_i32 = arith.constant 0 : i32
    %c0_i32_0 = arith.constant 0 : i32
    %c0_i32_1 = arith.constant 0 : i32
    return %c0_i32, %c0_i32_0 : i32, i32
  }
  func.func @transform_3(%arg0: i32) -> (i32, i32) {
    %c0_i32 = arith.constant 0 : i32
    %c0_i32_0 = arith.constant 0 : i32
    %c0_i32_1 = arith.constant 0 : i32
    return %c0_i32, %c0_i32_0 : i32, i32
  }
  func.func @transform_4(%arg0: i32) -> (i32, i32) {
    %c0_i32 = arith.constant 0 : i32
    %c0_i32_0 = arith.constant 0 : i32
    %c0_i32_1 = arith.constant 0 : i32
    return %c0_i32, %c0_i32_0 : i32, i32
  }
  func.func @transform_5(%arg0: i32) -> (i32, i32) {
    %c0_i32 = arith.constant 0 : i32
    %c0_i32_0 = arith.constant 0 : i32
    %c0_i32_1 = arith.constant 0 : i32
    return %c0_i32, %c0_i32_0 : i32, i32
  }
  func.func @transform_6(%arg0: i32) -> (i32, i32) {
    %c0_i32 = arith.constant 0 : i32
    %c0_i32_0 = arith.constant 0 : i32
    %c0_i32_1 = arith.constant 0 : i32
    return %c0_i32, %c0_i32_0 : i32, i32
  }
  func.func @transform_7(%arg0: i32) -> (i32, i32) {
    %c0_i32 = arith.constant 0 : i32
    %c0_i32_0 = arith.constant 0 : i32
    %c0_i32_1 = arith.constant 0 : i32
    return %c0_i32, %c0_i32_0 : i32, i32
  }
  func.func @transform_8(%arg0: i32) -> (i32, i32) {
    %c0_i32 = arith.constant 0 : i32
    %c0_i32_0 = arith.constant 0 : i32
    %c0_i32_1 = arith.constant 0 : i32
    return %c0_i32, %c0_i32_0 : i32, i32
  }
  func.func @transform_9(%arg0: i32) -> (i32, i32) {
    %c0_i32 = arith.constant 0 : i32
    %c0_i32_0 = arith.constant 0 : i32
    %c0_i32_1 = arith.constant 0 : i32
    return %c0_i32, %c0_i32_0 : i32, i32
  }
  func.func @transform_10(%arg0: i32) -> (i32, i32) {
    %c0_i32 = arith.constant 0 : i32
    %c0_i32_0 = arith.constant 0 : i32
    %c0_i32_1 = arith.constant 0 : i32
    return %c0_i32, %c0_i32_0 : i32, i32
  }
  func.func @transform_11(%arg0: i32) -> (i32, i32, i32) {
    %c0_i32 = arith.constant 0 : i32
    %c0_i32_0 = arith.constant 0 : i32
    %c0_i32_1 = arith.constant 0 : i32
    return %arg0, %c0_i32, %c0_i32_0 : i32, i32, i32
  }
}

</mosaic_0001>

<llo_original>
// kernel: tpu_custom_call.1
$region0: #{tpu_custom_call.1}
  #allocation0 [shape = 'u32[]', space=smem, size = 0x4, offset = 0x4, fixed_abs, tag = 'smem constant byte address 0x4 - core index']
  #allocation1 [shape = 'u32[144,128]{1,0:T(1,128)}', space=vmem, size = 0x12000, scoped, tag = 'internal scratch']
  #allocation2 [shape = 'bf16[16,32]{1,0:T(16,128)(2,1)}', space=vmem, size = 0x1000, scoped, tag = 'scratch operand']
  #allocation3 [shape = 'bf16[8,32]{1,0:T(8,128)(2,1)}', space=vmem, size = 0x800, scoped, tag = 'scratch operand']
  #allocation4 [shape = 'bf16[8,32]{1,0:T(8,128)(2,1)}', space=vmem, size = 0x800, scoped, tag = 'scratch operand']
  #allocation5 [shape = 'bf16[16,32]{1,0:T(16,128)(2,1)}', space=vmem, size = 0x1000, scoped, tag = 'scratch operand']
  #allocation6 [shape = 'bf16[16,32]{1,0:T(16,128)(2,1)}', space=vmem, size = 0x1000, scoped, tag = 'scratch operand']
  #allocation7 [shape = 'bf16[8,32]{1,0:T(8,128)(2,1)}', space=vmem, size = 0x800, scoped, tag = 'scratch operand']
  #allocation8 [shape = 'f32[8,24]{1,0:T(8,128)}', space=vmem, size = 0x1000, scoped, tag = 'scratch operand']
  %s0 = inlined_call_operand.hbm [shape: f32[2,8,32], index: 0, kind: input, shape index: {}]
  %s1 = inlined_call_operand.hbm [shape: bf16[2,8,32], index: 1, kind: input, shape index: {}]
  %s2 = inlined_call_operand.hbm [shape: bf16[16,32], index: 2, kind: input, shape index: {}]
  %s3 = inlined_call_operand.hbm [shape: bf16[32,32], index: 3, kind: input, shape index: {}]
  %s4 = inlined_call_operand.hbm [shape: bf16[32,32], index: 4, kind: input, shape index: {}]
  %s5 = inlined_call_operand.vmem [shape: bf16[32,32], index: 5, kind: input, shape index: {}]
  %s6 = inlined_call_operand.vmem [shape: f32[1,32], index: 6, kind: input, shape index: {}]
  %s7 = inlined_call_operand.vmem [shape: f32[1,32], index: 7, kind: input, shape index: {}]
  %s8 = inlined_call_operand.hbm [shape: bf16[32,32], index: 8, kind: input, shape index: {}]
  %s9 = inlined_call_operand.vmem [shape: f32[1,32], index: 9, kind: input, shape index: {}]
  %s10 = inlined_call_operand.vmem [shape: f32[1,32], index: 10, kind: input, shape index: {}]
  %s11 = inlined_call_operand.hbm [shape: f32[2,8,32], index: 11, kind: output, shape index: {}]
  %s12 = sld [smem:[#allocation0]]
  $region101: #{tpu_custom_call.1} parent=0
    _
  %s14 = ssub.s32 1, %s12
  %s15 = scalar_select 0, %s14, %s12
  $region1: #{tpu_custom_call.1} parent=0
    #allocation9 [shape = 'u8[8192]{0}', space=vmem, size = 0x2000, scoped, tag = 'input window, operand 0']
    #allocation10 [shape = 's32[2]{0}', space=sflag, size = 0x8, scoped, tag = 'scoped memory for tpu_custom_call.1']
    #allocation11 [shape = 's32[2]{0}', space=sflag, size = 0x8, scoped, tag = 'scoped memory for tpu_custom_call.1']
    #allocation12 [shape = 'u8[4096]{0}', space=vmem, size = 0x1000, scoped, tag = 'input window, operand 1']
    #allocation13 [shape = 's32[2]{0}', space=sflag, size = 0x8, scoped, tag = 'scoped memory for tpu_custom_call.1']
    #allocation14 [shape = 'u8[4096]{0}', space=vmem, size = 0x1000, scoped, tag = 'input window, operand 2, single buffered']
    #allocation15 [shape = 'u8[8192]{0}', space=vmem, size = 0x2000, scoped, tag = 'input window, operand 3, single buffered']
    #allocation16 [shape = 's32[1]{0}', space=sflag, size = 0x4, scoped, tag = 'scoped memory for tpu_custom_call.1']
    #allocation17 [shape = 'u8[8192]{0}', space=vmem, size = 0x2000, scoped, tag = 'input window, operand 4, single buffered']
    #allocation18 [shape = 'u8[8192]{0}', space=vmem, size = 0x2000, scoped, tag = 'input window, operand 8, single buffered']
    #allocation19 [shape = 's32[1]{0}', space=sflag, size = 0x4, scoped, tag = 'scoped memory for tpu_custom_call.1']
    #allocation20 [shape = 'u8[8192]{0}', space=vmem, size = 0x2000, scoped, tag = 'output window, operand 0']
    %16 = vsyncpa [#allocation10], 0
    %s17 = scalar_lea.sflag [#allocation10], 1
    %18 = vsyncpa %s17, 0
    %19 = vsyncpa [#allocation13], 0
    %s20 = scalar_lea.sflag [#allocation13], 1
    %21 = vsyncpa %s20, 0
    %22 = vsyncpa [#allocation16], 0
    %23 = vsyncpa [#allocation19], 0
    %24 = vsyncpa [#allocation11], 0
    %s25 = scalar_lea.sflag [#allocation11], 1
    %26 = vsyncpa %s25, 0
    loop: start=0, step=1, limit=4
    $region2: #{tpu_custom_call.1} parent=1 // loop_pre_header
      _
    $region3: #{tpu_custom_call.1} parent=1 // loop_header
      %s28 = sphi 0, %s32
      %p29 = scmp.ge.s32.totalorder %s28, 4
      %s38 = sphi 0, %s40
      %s41 = sphi 0, %s38
      %s42 = sphi 0, %s41
      %s58 = sphi 0, %s42
      %s64 = sphi 0, %s66
      %s67 = sphi 0, %s64
      %s68 = sphi 0, %s67
      %s84 = sphi 0, %s68
      %s88 = sphi 0, %s88
      %s90 = sphi 0, %s88
      %s91 = sphi 0, %s90
      %s105 = sphi 0, %s91
      %s109 = sphi 0, %s109
      %s111 = sphi 0, %s109
      %s112 = sphi 0, %s111
      %s126 = sphi 0, %s112
      %s130 = sphi 0, %s130
      %s132 = sphi 0, %s130
      %s133 = sphi 0, %s132
      %s147 = sphi 0, %s133
      %s151 = sphi 0, %s151
      %s153 = sphi 0, %s151
      %s154 = sphi 0, %s153
      %s168 = sphi 0, %s154
      %s172 = sphi 0, %s172
      %s174 = sphi 0, %s172
      %s175 = sphi 0, %s174
      %s189 = sphi 0, %s175
      %s193 = sphi 0, %s193
      %s195 = sphi 0, %s193
      %s196 = sphi 0, %s195
      %s210 = sphi 0, %s196
      %s214 = sphi 0, %s214
      %s216 = sphi 0, %s214
      %s217 = sphi 0, %s216
      %s231 = sphi 0, %s217
      %s235 = sphi 0, %s235
      %s237 = sphi 0, %s235
      %s238 = sphi 0, %s237
      %s252 = sphi 0, %s238
      %s256 = sphi 0, %s256
      %s258 = sphi 0, %s256
      %s259 = sphi 0, %s258
      %s273 = sphi 0, %s259
      %s279 = sphi 0, %s281
      %s282 = sphi 0, %s279
      %s283 = sphi 0, %s282
      %s299 = sphi 0, %s283
    $region4: #{tpu_custom_call.1} parent=1 // loop_header_branch
      %31 = sbr.rel (%p29) target = $region8
    $region5: #{tpu_custom_call.1} parent=1 // loop_body
      %s33 = ssub.s32 %s28, 1
      %s34 = ssub.s32 %s28, 2
      %s35 = sadd.s32 %s28, 1
      %s36 = ssub.s32 %s28, %s35
      %p37 = scmp.eq.s32.totalorder %s36, 0
      %s39 = sadd.s32 %s38, 1
      %s40 = scalar_select %p37, %s38, %s39
      %p43 = pneg %p37
      %p44 = scmp.eq.s32.totalorder %s28, 1
      %p45 = por %p43, %p44
      %p46 = scmp.ne.s32.totalorder %s38, %s41
      %p47 = scmp.eq.s32.totalorder %s28, 0
      %p48 = por %p46, %p47
      %p49 = scmp.ne.s32.totalorder %s38, %s41
      %p50 = scmp.eq.s32.totalorder %s33, 1
      %p51 = por %p49, %p50
      %p52 = scmp.ne.s32.totalorder %s41, %s42
      %p53 = scmp.eq.s32.totalorder %s33, 0
      %p54 = por %p52, %p53
      %p55 = scmp.ne.s32.totalorder %s41, %s42
      %p56 = scmp.eq.s32.totalorder %s34, 1
      %p57 = por %p55, %p56
      %p59 = scmp.ne.s32.totalorder %s42, %s58
      %p60 = scmp.eq.s32.totalorder %s34, 0
      %p61 = por %p59, %p60
      %s62 = ssub.s32 %s28, %s35
      %p63 = scmp.eq.s32.totalorder %s62, 0
      %s65 = sadd.s32 %s64, 1
      %s66 = scalar_select %p63, %s64, %s65
      %p69 = pneg %p63
      %p70 = scmp.eq.s32.totalorder %s28, 1
      %p71 = por %p69, %p70
      %p72 = scmp.ne.s32.totalorder %s64, %s67
      %p73 = scmp.eq.s32.totalorder %s28, 0
      %p74 = por %p72, %p73
      %p75 = scmp.ne.s32.totalorder %s64, %s67
      %p76 = scmp.eq.s32.totalorder %s33, 1
      %p77 = por %p75, %p76
      %p78 = scmp.ne.s32.totalorder %s67, %s68
      %p79 = scmp.eq.s32.totalorder %s33, 0
      %p80 = por %p78, %p79
      %p81 = scmp.ne.s32.totalorder %s67, %s68
      %p82 = scmp.eq.s32.totalorder %s34, 1
      %p83 = por %p81, %p82
      %p85 = scmp.ne.s32.totalorder %s68, %s84
      %p86 = scmp.eq.s32.totalorder %s34, 0
      %p87 = por %p85, %p86
      %s89 = sadd.s32 %s88, 1
      %p92 = scmp.eq.s32.totalorder %s28, 1
      %p93 = scmp.ne.s32.totalorder %s88, %s90
      %p94 = scmp.eq.s32.totalorder %s28, 0
      %p95 = por %p93, %p94
      %p96 = scmp.ne.s32.totalorder %s88, %s90
      %p97 = scmp.eq.s32.totalorder %s33, 1
      %p98 = por %p96, %p97
      %p99 = scmp.ne.s32.totalorder %s90, %s91
      %p100 = scmp.eq.s32.totalorder %s33, 0
      %p101 = por %p99, %p100
      %p102 = scmp.ne.s32.totalorder %s90, %s91
      %p103 = scmp.eq.s32.totalorder %s34, 1
      %p104 = por %p102, %p103
      %p106 = scmp.ne.s32.totalorder %s91, %s105
      %p107 = scmp.eq.s32.totalorder %s34, 0
      %p108 = por %p106, %p107
      %s110 = sadd.s32 %s109, 1
      %p113 = scmp.eq.s32.totalorder %s28, 1
      %p114 = scmp.ne.s32.totalorder %s109, %s111
      %p115 = scmp.eq.s32.totalorder %s28, 0
      %p116 = por %p114, %p115
      %p117 = scmp.ne.s32.totalorder %s109, %s111
      %p118 = scmp.eq.s32.totalorder %s33, 1
      %p119 = por %p117, %p118
      %p120 = scmp.ne.s32.totalorder %s111, %s112
      %p121 = scmp.eq.s32.totalorder %s33, 0
      %p122 = por %p120, %p121
      %p123 = scmp.ne.s32.totalorder %s111, %s112
      %p124 = scmp.eq.s32.totalorder %s34, 1
      %p125 = por %p123, %p124
      %p127 = scmp.ne.s32.totalorder %s112, %s126
      %p128 = scmp.eq.s32.totalorder %s34, 0
      %p129 = por %p127, %p128
      %s131 = sadd.s32 %s130, 1
      %p134 = scmp.eq.s32.totalorder %s28, 1
      %p135 = scmp.ne.s32.totalorder %s130, %s132
      %p136 = scmp.eq.s32.totalorder %s28, 0
      %p137 = por %p135, %p136
      %p138 = scmp.ne.s32.totalorder %s130, %s132
      %p139 = scmp.eq.s32.totalorder %s33, 1
      %p140 = por %p138, %p139
      %p141 = scmp.ne.s32.totalorder %s132, %s133
      %p142 = scmp.eq.s32.totalorder %s33, 0
      %p143 = por %p141, %p142
      %p144 = scmp.ne.s32.totalorder %s132, %s133
      %p145 = scmp.eq.s32.totalorder %s34, 1
      %p146 = por %p144, %p145
      %p148 = scmp.ne.s32.totalorder %s133, %s147
      %p149 = scmp.eq.s32.totalorder %s34, 0
      %p150 = por %p148, %p149
      %s152 = sadd.s32 %s151, 1
      %p155 = scmp.eq.s32.totalorder %s28, 1
      %p156 = scmp.ne.s32.totalorder %s151, %s153
      %p157 = scmp.eq.s32.totalorder %s28, 0
      %p158 = por %p156, %p157
      %p159 = scmp.ne.s32.totalorder %s151, %s153
      %p160 = scmp.eq.s32.totalorder %s33, 1
      %p161 = por %p159, %p160
      %p162 = scmp.ne.s32.totalorder %s153, %s154
      %p163 = scmp.eq.s32.totalorder %s33, 0
      %p164 = por %p162, %p163
      %p165 = scmp.ne.s32.totalorder %s153, %s154
      %p166 = scmp.eq.s32.totalorder %s34, 1
      %p167 = por %p165, %p166
      %p169 = scmp.ne.s32.totalorder %s154, %s168
      %p170 = scmp.eq.s32.totalorder %s34, 0
      %p171 = por %p169, %p170
      %s173 = sadd.s32 %s172, 1
      %p176 = scmp.eq.s32.totalorder %s28, 1
      %p177 = scmp.ne.s32.totalorder %s172, %s174
      %p178 = scmp.eq.s32.totalorder %s28, 0
      %p179 = por %p177, %p178
      %p180 = scmp.ne.s32.totalorder %s172, %s174
      %p181 = scmp.eq.s32.totalorder %s33, 1
      %p182 = por %p180, %p181
      %p183 = scmp.ne.s32.totalorder %s174, %s175
      %p184 = scmp.eq.s32.totalorder %s33, 0
      %p185 = por %p183, %p184
      %p186 = scmp.ne.s32.totalorder %s174, %s175
      %p187 = scmp.eq.s32.totalorder %s34, 1
      %p188 = por %p186, %p187
      %p190 = scmp.ne.s32.totalorder %s175, %s189
      %p191 = scmp.eq.s32.totalorder %s34, 0
      %p192 = por %p190, %p191
      %s194 = sadd.s32 %s193, 1
      %p197 = scmp.eq.s32.totalorder %s28, 1
      %p198 = scmp.ne.s32.totalorder %s193, %s195
      %p199 = scmp.eq.s32.totalorder %s28, 0
      %p200 = por %p198, %p199
      %p201 = scmp.ne.s32.totalorder %s193, %s195
      %p202 = scmp.eq.s32.totalorder %s33, 1
      %p203 = por %p201, %p202
      %p204 = scmp.ne.s32.totalorder %s195, %s196
      %p205 = scmp.eq.s32.totalorder %s33, 0
      %p206 = por %p204, %p205
      %p207 = scmp.ne.s32.totalorder %s195, %s196
      %p208 = scmp.eq.s32.totalorder %s34, 1
      %p209 = por %p207, %p208
      %p211 = scmp.ne.s32.totalorder %s196, %s210
      %p212 = scmp.eq.s32.totalorder %s34, 0
      %p213 = por %p211, %p212
      %s215 = sadd.s32 %s214, 1
      %p218 = scmp.eq.s32.totalorder %s28, 1
      %p219 = scmp.ne.s32.totalorder %s214, %s216
      %p220 = scmp.eq.s32.totalorder %s28, 0
      %p221 = por %p219, %p220
      %p222 = scmp.ne.s32.totalorder %s214, %s216
      %p223 = scmp.eq.s32.totalorder %s33, 1
      %p224 = por %p222, %p223
      %p225 = scmp.ne.s32.totalorder %s216, %s217
      %p226 = scmp.eq.s32.totalorder %s33, 0
      %p227 = por %p225, %p226
      %p228 = scmp.ne.s32.totalorder %s216, %s217
      %p229 = scmp.eq.s32.totalorder %s34, 1
      %p230 = por %p228, %p229
      %p232 = scmp.ne.s32.totalorder %s217, %s231
      %p233 = scmp.eq.s32.totalorder %s34, 0
      %p234 = por %p232, %p233
      %s236 = sadd.s32 %s235, 1
      %p239 = scmp.eq.s32.totalorder %s28, 1
      %p240 = scmp.ne.s32.totalorder %s235, %s237
      %p241 = scmp.eq.s32.totalorder %s28, 0
      %p242 = por %p240, %p241
      %p243 = scmp.ne.s32.totalorder %s235, %s237
      %p244 = scmp.eq.s32.totalorder %s33, 1
      %p245 = por %p243, %p244
      %p246 = scmp.ne.s32.totalorder %s237, %s238
      %p247 = scmp.eq.s32.totalorder %s33, 0
      %p248 = por %p246, %p247
      %p249 = scmp.ne.s32.totalorder %s237, %s238
      %p250 = scmp.eq.s32.totalorder %s34, 1
      %p251 = por %p249, %p250
      %p253 = scmp.ne.s32.totalorder %s238, %s252
      %p254 = scmp.eq.s32.totalorder %s34, 0
      %p255 = por %p253, %p254
      %s257 = sadd.s32 %s256, 1
      %p260 = scmp.eq.s32.totalorder %s28, 1
      %p261 = scmp.ne.s32.totalorder %s256, %s258
      %p262 = scmp.eq.s32.totalorder %s28, 0
      %p263 = por %p261, %p262
      %p264 = scmp.ne.s32.totalorder %s256, %s258
      %p265 = scmp.eq.s32.totalorder %s33, 1
      %p266 = por %p264, %p265
      %p267 = scmp.ne.s32.totalorder %s258, %s259
      %p268 = scmp.eq.s32.totalorder %s33, 0
      %p269 = por %p267, %p268
      %p270 = scmp.ne.s32.totalorder %s258, %s259
      %p271 = scmp.eq.s32.totalorder %s34, 1
      %p272 = por %p270, %p271
      %p274 = scmp.ne.s32.totalorder %s259, %s273
      %p275 = scmp.eq.s32.totalorder %s34, 0
      %p276 = por %p274, %p275
      %s277 = ssub.s32 %s28, %s35
      %p278 = scmp.eq.s32.totalorder %s277, 0
      %s280 = sadd.s32 %s279, 1
      %s281 = scalar_select %p278, %s279, %s280
      %p284 = pneg %p278
      %p285 = scmp.eq.s32.totalorder %s28, 1
      %p286 = por %p284, %p285
      %p287 = scmp.ne.s32.totalorder %s279, %s282
      %p288 = scmp.eq.s32.totalorder %s28, 0
      %p289 = por %p287, %p288
      %p290 = scmp.ne.s32.totalorder %s279, %s282
      %p291 = scmp.eq.s32.totalorder %s33, 1
      %p292 = por %p290, %p291
      %p293 = scmp.ne.s32.totalorder %s282, %s283
      %p294 = scmp.eq.s32.totalorder %s33, 0
      %p295 = por %p293, %p294
      %p296 = scmp.ne.s32.totalorder %s282, %s283
      %p297 = scmp.eq.s32.totalorder %s34, 1
      %p298 = por %p296, %p297
      %p300 = scmp.ne.s32.totalorder %s283, %s299
      %p301 = scmp.eq.s32.totalorder %s34, 0
      %p302 = por %p300, %p301
      %p303 = scmp.le.s32.totalorder 1, %s28
      %p304 = scmp.lt.s32.totalorder %s28, 3
      %p305 = pnand %p303, %p304
      %p306 = pneg %p305
      // Predicated region
      $region9: #{tpu_custom_call.1} parent=5 // pred_check
        _
      $region10: #{tpu_custom_call.1} parent=5 // pred_check_branch
        %308 = sbr.rel (%p305) target = $region12
      $region11: #{tpu_custom_call.1} parent=5 // pred_region
        %s309 = ssub.s32 %s28, 1
        // Predicated region
        $region13: #{tpu_custom_call.1} parent=11 // pred_check
          %p310 = pneg %p101
        $region14: #{tpu_custom_call.1} parent=11 // pred_check_branch
          %312 = sbr.rel (%p310) target = $region16
        $region15: #{tpu_custom_call.1} parent=11 // pred_region
          %s314 = ssub.s32 128, 128
          %315 = vsyncadd [#allocation13], %s314
          %s316 = sshll.u32 [#allocation14], 4
          %s317 = int_to_ptr.vmem [resolvable:$true] %s316
          %322 = dma.hbm_to_vmem [thread:$0]  %s2, 128, %s317, [#allocation13], 64, 64, 4
        $region16: #{tpu_custom_call.1} parent=11 // pred_fallthru
          _
        // Predicated region
        $region17: #{tpu_custom_call.1} parent=11 // pred_check
          %p323 = pneg %p122
        $region18: #{tpu_custom_call.1} parent=11 // pred_check_branch
          %325 = sbr.rel (%p323) target = $region20
        $region19: #{tpu_custom_call.1} parent=11 // pred_region
          %s327 = ssub.s32 256, 256
          %328 = vsyncadd [#allocation16], %s327
          %s329 = sshll.u32 [#allocation15], 4
          %s330 = int_to_ptr.vmem [resolvable:$true] %s329
          %335 = dma.hbm_to_vmem [thread:$0]  %s3, 256, %s330, [#allocation16], 64, 64, 4
        $region20: #{tpu_custom_call.1} parent=11 // pred_fallthru
          _
        // Predicated region
        $region21: #{tpu_custom_call.1} parent=11 // pred_check
          %p336 = pneg %p143
        $region22: #{tpu_custom_call.1} parent=11 // pred_check_branch
          %338 = sbr.rel (%p336) target = $region24
        $region23: #{tpu_custom_call.1} parent=11 // pred_region
          %s340 = ssub.s32 256, 256
          %341 = vsyncadd [#allocation16], %s340
          %s342 = sshll.u32 [#allocation17], 4
          %s343 = int_to_ptr.vmem [resolvable:$true] %s342
          %348 = dma.hbm_to_vmem [thread:$0]  %s4, 256, %s343, [#allocation16], 64, 64, 4
        $region24: #{tpu_custom_call.1} parent=11 // pred_fallthru
          _
        // Predicated region
        $region25: #{tpu_custom_call.1} parent=11 // pred_check
          %p349 = pneg %p164
        $region26: #{tpu_custom_call.1} parent=11 // pred_check_branch
          %351 = sbr.rel (%p349) target = $region28
        $region27: #{tpu_custom_call.1} parent=11 // pred_region
          _
        $region28: #{tpu_custom_call.1} parent=11 // pred_fallthru
          _
        // Predicated region
        $region29: #{tpu_custom_call.1} parent=11 // pred_check
          %p352 = pneg %p185
        $region30: #{tpu_custom_call.1} parent=11 // pred_check_branch
          %354 = sbr.rel (%p352) target = $region32
        $region31: #{tpu_custom_call.1} parent=11 // pred_region
          _
        $region32: #{tpu_custom_call.1} parent=11 // pred_fallthru
          _
        // Predicated region
        $region33: #{tpu_custom_call.1} parent=11 // pred_check
          %p355 = pneg %p206
        $region34: #{tpu_custom_call.1} parent=11 // pred_check_branch
          %357 = sbr.rel (%p355) target = $region36
        $region35: #{tpu_custom_call.1} parent=11 // pred_region
          _
        $region36: #{tpu_custom_call.1} parent=11 // pred_fallthru
          _
        // Predicated region
        $region37: #{tpu_custom_call.1} parent=11 // pred_check
          %p358 = pneg %p227
        $region38: #{tpu_custom_call.1} parent=11 // pred_check_branch
          %360 = sbr.rel (%p358) target = $region40
        $region39: #{tpu_custom_call.1} parent=11 // pred_region
          %s362 = ssub.s32 256, 256
          %363 = vsyncadd [#allocation19], %s362
          %s364 = sshll.u32 [#allocation18], 4
          %s365 = int_to_ptr.vmem [resolvable:$true] %s364
          %370 = dma.hbm_to_vmem [thread:$0]  %s8, 256, %s365, [#allocation19], 64, 64, 4
        $region40: #{tpu_custom_call.1} parent=11 // pred_fallthru
          _
        // Predicated region
        $region41: #{tpu_custom_call.1} parent=11 // pred_check
          %p371 = pneg %p248
        $region42: #{tpu_custom_call.1} parent=11 // pred_check_branch
          %373 = sbr.rel (%p371) target = $region44
        $region43: #{tpu_custom_call.1} parent=11 // pred_region
          _
        $region44: #{tpu_custom_call.1} parent=11 // pred_fallthru
          _
        // Predicated region
        $region45: #{tpu_custom_call.1} parent=11 // pred_check
          %p374 = pneg %p269
        $region46: #{tpu_custom_call.1} parent=11 // pred_check_branch
          %376 = sbr.rel (%p374) target = $region48
        $region47: #{tpu_custom_call.1} parent=11 // pred_region
          _
        $region48: #{tpu_custom_call.1} parent=11 // pred_fallthru
          _
      $region12: #{tpu_custom_call.1} parent=5 // pred_fallthru
        _
      %p377 = scmp.lt.s32.totalorder %s28, 2
      // Predicated region
      $region49: #{tpu_custom_call.1} parent=5 // pred_check
        %p378 = pneg %p377
      $region50: #{tpu_custom_call.1} parent=5 // pred_check_branch
        %380 = sbr.rel (%p378) target = $region52
      $region51: #{tpu_custom_call.1} parent=5 // pred_region
        // Predicated region
        $region53: #{tpu_custom_call.1} parent=51 // pred_check
          %p381 = pneg %p48
        $region54: #{tpu_custom_call.1} parent=51 // pred_check_branch
          %383 = sbr.rel (%p381) target = $region56
        $region55: #{tpu_custom_call.1} parent=51 // pred_region
          %s384 = sand.u32 %s38, 1
          %s385 = scalar_lea.sflag [#allocation10], %s384
          %s386 = sand.u32 %s38, 1
          %s387 = smul.addr %s386, 8
          %s388 = scalar_lea.vmem [#allocation9], %s387
          %s390 = ssub.s32 128, 128
          %391 = vsyncadd %s385, %s390
          %s392 = smul.addr %s28, 128
          %s393 = scalar_lea.hbm %s0, %s392
          %s395 = sshll.u32 %s388, 4
          %s396 = int_to_ptr.vmem [resolvable:$true] %s395
          %398 = dma.hbm_to_vmem [thread:$0]  %s393, 128, %s396, %s385
        $region56: #{tpu_custom_call.1} parent=51 // pred_fallthru
          _
        // Predicated region
        $region57: #{tpu_custom_call.1} parent=51 // pred_check
          %p399 = pneg %p74
        $region58: #{tpu_custom_call.1} parent=51 // pred_check_branch
          %401 = sbr.rel (%p399) target = $region60
        $region59: #{tpu_custom_call.1} parent=51 // pred_region
          %s402 = sand.u32 %s28, 1
          %s403 = scalar_lea.sflag [#allocation13], %s402
          %s404 = sand.u32 %s64, 1
          %s405 = smul.addr %s404, 4
          %s406 = scalar_lea.vmem [#allocation12], %s405
          %s408 = ssub.s32 64, 64
          %409 = vsyncadd %s403, %s408
          %s410 = smul.addr %s28, 64
          %s411 = scalar_lea.hbm %s1, %s410
          %s413 = sshll.u32 %s406, 4
          %s414 = int_to_ptr.vmem [resolvable:$true] %s413
          %416 = dma.hbm_to_vmem [thread:$0]  %s411, 64, %s414, %s403
        $region60: #{tpu_custom_call.1} parent=51 // pred_fallthru
          _
      $region52: #{tpu_custom_call.1} parent=5 // pred_fallthru
        _
      %p417 = scmp.le.s32.totalorder 1, %s28
      %p418 = scmp.lt.s32.totalorder %s28, 3
      %p419 = pnand %p417, %p418
      %p420 = pneg %p419
      // Predicated region
      $region61: #{tpu_custom_call.1} parent=5 // pred_check
        _
      $region62: #{tpu_custom_call.1} parent=5 // pred_check_branch
        %422 = sbr.rel (%p419) target = $region64
      $region63: #{tpu_custom_call.1} parent=5 // pred_region
        %s423 = ssub.s32 %s28, 1
        %s424 = sand.u32 %s41, 1
        %s425 = scalar_lea.sflag [#allocation10], %s424
        %s426 = sand.u32 %s41, 1
        %s427 = smul.addr %s426, 8
        %s428 = scalar_lea.vmem [#allocation9], %s427
        // Predicated region
        $region65: #{tpu_custom_call.1} parent=63 // pred_check
          %p429 = pneg %p54
        $region66: #{tpu_custom_call.1} parent=63 // pred_check_branch
          %431 = sbr.rel (%p429) target = $region68
        $region67: #{tpu_custom_call.1} parent=63 // pred_region
          %432 = dma.done %s425, 128
        $region68: #{tpu_custom_call.1} parent=63 // pred_fallthru
          _
        %s433 = sand.u32 %s33, 1
        %s434 = scalar_lea.sflag [#allocation13], %s433
        %s435 = sand.u32 %s67, 1
        %s436 = smul.addr %s435, 4
        %s437 = scalar_lea.vmem [#allocation12], %s436
        // Predicated region
        $region69: #{tpu_custom_call.1} parent=63 // pred_check
          %p438 = pneg %p80
        $region70: #{tpu_custom_call.1} parent=63 // pred_check_branch
          %440 = sbr.rel (%p438) target = $region72
        $region71: #{tpu_custom_call.1} parent=63 // pred_region
          %441 = dma.done %s434, 64
        $region72: #{tpu_custom_call.1} parent=63 // pred_fallthru
          _
        // Predicated region
        $region73: #{tpu_custom_call.1} parent=63 // pred_check
          %p442 = pneg %p101
        $region74: #{tpu_custom_call.1} parent=63 // pred_check_branch
          %444 = sbr.rel (%p442) target = $region76
        $region75: #{tpu_custom_call.1} parent=63 // pred_region
          %445 = dma.done [#allocation13], 128
        $region76: #{tpu_custom_call.1} parent=63 // pred_fallthru
          _
        // Predicated region
        $region77: #{tpu_custom_call.1} parent=63 // pred_check
          %p446 = pneg %p122
        $region78: #{tpu_custom_call.1} parent=63 // pred_check_branch
          %448 = sbr.rel (%p446) target = $region80
        $region79: #{tpu_custom_call.1} parent=63 // pred_region
          %449 = dma.done [#allocation16], 256
        $region80: #{tpu_custom_call.1} parent=63 // pred_fallthru
          _
        // Predicated region
        $region81: #{tpu_custom_call.1} parent=63 // pred_check
          %p450 = pneg %p143
        $region82: #{tpu_custom_call.1} parent=63 // pred_check_branch
          %452 = sbr.rel (%p450) target = $region84
        $region83: #{tpu_custom_call.1} parent=63 // pred_region
          %453 = dma.done [#allocation16], 256
        $region84: #{tpu_custom_call.1} parent=63 // pred_fallthru
          _
        // Predicated region
        $region85: #{tpu_custom_call.1} parent=63 // pred_check
          %p454 = pneg %p227
        $region86: #{tpu_custom_call.1} parent=63 // pred_check_branch
          %456 = sbr.rel (%p454) target = $region88
        $region87: #{tpu_custom_call.1} parent=63 // pred_region
          %457 = dma.done [#allocation19], 256
        $region88: #{tpu_custom_call.1} parent=63 // pred_fallthru
          _
        %s458 = sand.u32 %s41, 1
        %s459 = scalar_lea.sflag [#allocation10], %s458
        %s460 = sand.u32 %s41, 1
        %s461 = smul.addr %s460, 8
        %s462 = scalar_lea.vmem [#allocation9], %s461
        %p463 = pneg %p54
        %p464 = pneg %p51
        %s465 = sand.u32 %s33, 1
        %s466 = scalar_lea.sflag [#allocation13], %s465
        %s467 = sand.u32 %s67, 1
        %s468 = smul.addr %s467, 4
        %s469 = scalar_lea.vmem [#allocation12], %s468
        %p470 = pneg %p80
        %p471 = pneg %p77
        %p472 = pneg %p101
        %p473 = pneg %p98
        %p474 = pneg %p122
        %p475 = pneg %p119
        %p476 = pneg %p143
        %p477 = pneg %p140
        %p478 = pneg %p164
        %p479 = pneg %p161
        %p480 = pneg %p185
        %p481 = pneg %p182
        %p482 = pneg %p206
        %p483 = pneg %p203
        %p484 = pneg %p227
        %p485 = pneg %p224
        %p486 = pneg %p248
        %p487 = pneg %p245
        %p488 = pneg %p269
        %p489 = pneg %p266
        %p490 = pneg %p295
        %p491 = pneg %p292
        %s492 = sand.u32 %s282, 1
        %s493 = scalar_lea.sflag [#allocation11], %s492
        %s494 = sand.u32 %s282, 1
        %s495 = smul.addr %s494, 8
        %s496 = scalar_lea.vmem [#allocation20], %s495
        %v498 = vld [vmem:[%s428] sm:$0xff]
        %v499 = vpack.c.bf16 %v498, %v498
        %v500 = vld [vmem:[%s437] sm:$0xf]
        %vm501 = vcmask 257024
        %502 = vst.msk [vmem:[#allocation2] sm:$0xf] %vm501, %v500
        %v504 = vrot.slane %v499, 4
        %vm506 = vcmask 261124
        %507 = vst.msk [vmem:[#allocation2] sm:$0xf0] %vm506, %v504
        %v508 = vld [vmem:[#allocation2] sm:$0xff]
        %v509 = vld [vmem:[#allocation15] sm:$0xf]
        %v510 = vld [vmem:[#allocation15 + $0x4] sm:$0xf]
        %v511 = vld [vmem:[#allocation15 + $0x8] sm:$0xf]
        %v512 = vld [vmem:[#allocation15 + $0xc] sm:$0xf]
        %v517 = vunpack.c.l.b16 %v509
        %v518 = vunpack.c.l.b16 %v510
        %v519 = vunpack.c.l.b16 %v511
        %v520 = vunpack.c.l.b16 %v512
        %v521 = vpack.c.b16 %v518, %v517
        %v522 = vpack.c.b16 %v520, %v519
        %vm525 = vcmask 261120
        %v527 = vsel %vm525, %v499, 0
        %529 = vmatprep.subr.bf16.mxu0 0
        %530 = vmatpush1.bf16.msra.mxu0 %v521
        %531 = vmatprep.subr.bf16.mxu0 0
        %532 = vmatpush1.bf16.msra.mxu0 %v522
        %533 = vmatprep.subr.bf16.mxu0 0
        %534 = vmatpush1.bf16.msra.mxu0 0
        %535 = vmatprep.subr.bf16.mxu0 0
        %536 = vmatpush1.bf16.msra.mxu0 0
        %537 = vmatprep.subr.bf16.mxu0 0
        %538 = vmatpush1.bf16.msra.mxu0 0
        %539 = vmatprep.subr.bf16.mxu0 0
        %540 = vmatpush1.bf16.msra.mxu0 0
        %541 = vmatprep.subr.bf16.mxu0 0
        %542 = vmatpush1.bf16.msra.mxu0 0
        %543 = vmatprep.subr.bf16.mxu0 0
        %544 = vmatpush1.bf16.msra.mxu0 0
        %545 = vmatprep.subr.bf16.mxu0 0
        %546 = vmatpush1.bf16.msra.mxu0 0
        %547 = vmatprep.subr.bf16.mxu0 0
        %548 = vmatpush1.bf16.msra.mxu0 0
        %549 = vmatprep.subr.bf16.mxu0 0
        %550 = vmatpush1.bf16.msra.mxu0 0
        %551 = vmatprep.subr.bf16.mxu0 0
        %552 = vmatpush1.bf16.msra.mxu0 0
        %553 = vmatprep.subr.bf16.mxu0 0
        %554 = vmatpush1.bf16.msra.mxu0 0
        %555 = vmatprep.subr.bf16.mxu0 0
        %556 = vmatpush1.bf16.msra.mxu0 0
        %557 = vmatprep.subr.bf16.mxu0 0
        %558 = vmatpush1.bf16.msra.mxu0 0
        %559 = vmatprep.subr.bf16.mxu0 0
        %560 = vmatpush1.bf16.msra.mxu0 0
        %561 = vmatprep.mubr.bf16.mxu0 0
        %562 = vmatmul.mubr.bf16.gmra.mrb[0].mxu0 %v527
        %v563 = vpop.f32.mrb[0].mxu0
        %v564 = vadd.f32 0.0, %v563
        %v565 = vpop.f32.mrb[0].mxu0
        %v566 = vpop.f32.mrb[0].mxu0
        %v567 = vpop.f32.mrb[0].mxu0
        %568 = vdwg.mxu0
        %v569 = vld [vmem:[#allocation17] sm:$0xf]
        %v570 = vld [vmem:[#allocation17 + $0x4] sm:$0xf]
        %v571 = vld [vmem:[#allocation17 + $0x8] sm:$0xf]
        %v572 = vld [vmem:[#allocation17 + $0xc] sm:$0xf]
        %v577 = vunpack.c.l.b16 %v569
        %v578 = vunpack.c.l.b16 %v570
        %v579 = vunpack.c.l.b16 %v571
        %v580 = vunpack.c.l.b16 %v572
        %v581 = vpack.c.b16 %v578, %v577
        %v582 = vpack.c.b16 %v580, %v579
        %v586 = vsel %vm525, %v508, 0
        %588 = vmatprep.subr.bf16.mxu0 0
        %589 = vmatpush1.bf16.msra.mxu0 %v581
        %590 = vmatprep.subr.bf16.mxu0 0
        %591 = vmatpush1.bf16.msra.mxu0 %v582
        %592 = vmatprep.subr.bf16.mxu0 0
        %593 = vmatpush1.bf16.msra.mxu0 0
        %594 = vmatprep.subr.bf16.mxu0 0
        %595 = vmatpush1.bf16.msra.mxu0 0
        %596 = vmatprep.subr.bf16.mxu0 0
        %597 = vmatpush1.bf16.msra.mxu0 0
        %598 = vmatprep.subr.bf16.mxu0 0
        %599 = vmatpush1.bf16.msra.mxu0 0
        %600 = vmatprep.subr.bf16.mxu0 0
        %601 = vmatpush1.bf16.msra.mxu0 0
        %602 = vmatprep.subr.bf16.mxu0 0
        %603 = vmatpush1.bf16.msra.mxu0 0
        %604 = vmatprep.subr.bf16.mxu0 0
        %605 = vmatpush1.bf16.msra.mxu0 0
        %606 = vmatprep.subr.bf16.mxu0 0
        %607 = vmatpush1.bf16.msra.mxu0 0
        %608 = vmatprep.subr.bf16.mxu0 0
        %609 = vmatpush1.bf16.msra.mxu0 0
        %610 = vmatprep.subr.bf16.mxu0 0
        %611 = vmatpush1.bf16.msra.mxu0 0
        %612 = vmatprep.subr.bf16.mxu0 0
        %613 = vmatpush1.bf16.msra.mxu0 0
        %614 = vmatprep.subr.bf16.mxu0 0
        %615 = vmatpush1.bf16.msra.mxu0 0
        %616 = vmatprep.subr.bf16.mxu0 0
        %617 = vmatpush1.bf16.msra.mxu0 0
        %618 = vmatprep.subr.bf16.mxu0 0
        %619 = vmatpush1.bf16.msra.mxu0 0
        %620 = vmatprep.mubr.bf16.mxu0 0
        %621 = vmatmul.mubr.bf16.gmra.mrb[0].mxu0 %v586
        %v622 = vpop.f32.mrb[0].mxu0
        %v623 = vadd.f32 0.0, %v622
        %v624 = vpop.f32.mrb[0].mxu0
        %v625 = vpop.f32.mrb[0].mxu0
        %v626 = vadd.f32 0.0, %v625
        %v627 = vpop.f32.mrb[0].mxu0
        %628 = vdwg.mxu0
        %v629 = vld [vmem:[%s5] sm:$0xf]
        %v630 = vld [vmem:[%s5 + $0x4] sm:$0xf]
        %v631 = vld [vmem:[%s5 + $0x8] sm:$0xf]
        %v632 = vld [vmem:[%s5 + $0xc] sm:$0xf]
        %v637 = vunpack.c.l.b16 %v629
        %v638 = vunpack.c.l.b16 %v630
        %v639 = vunpack.c.l.b16 %v631
        %v640 = vunpack.c.l.b16 %v632
        %v641 = vpack.c.b16 %v638, %v637
        %v642 = vpack.c.b16 %v640, %v639
        %645 = vmatprep.subr.bf16.mxu0 0
        %646 = vmatpush1.bf16.msra.mxu0 %v641
        %647 = vmatprep.subr.bf16.mxu0 0
        %648 = vmatpush1.bf16.msra.mxu0 %v642
        %649 = vmatprep.subr.bf16.mxu0 0
        %650 = vmatpush1.bf16.msra.mxu0 0
        %651 = vmatprep.subr.bf16.mxu0 0
        %652 = vmatpush1.bf16.msra.mxu0 0
        %653 = vmatprep.subr.bf16.mxu0 0
        %654 = vmatpush1.bf16.msra.mxu0 0
        %655 = vmatprep.subr.bf16.mxu0 0
        %656 = vmatpush1.bf16.msra.mxu0 0
        %657 = vmatprep.subr.bf16.mxu0 0
        %658 = vmatpush1.bf16.msra.mxu0 0
        %659 = vmatprep.subr.bf16.mxu0 0
        %660 = vmatpush1.bf16.msra.mxu0 0
        %661 = vmatprep.subr.bf16.mxu0 0
        %662 = vmatpush1.bf16.msra.mxu0 0
        %663 = vmatprep.subr.bf16.mxu0 0
        %664 = vmatpush1.bf16.msra.mxu0 0
        %665 = vmatprep.subr.bf16.mxu0 0
        %666 = vmatpush1.bf16.msra.mxu0 0
        %667 = vmatprep.subr.bf16.mxu0 0
        %668 = vmatpush1.bf16.msra.mxu0 0
        %669 = vmatprep.subr.bf16.mxu0 0
        %670 = vmatpush1.bf16.msra.mxu0 0
        %671 = vmatprep.subr.bf16.mxu0 0
        %672 = vmatpush1.bf16.msra.mxu0 0
        %673 = vmatprep.subr.bf16.mxu0 0
        %674 = vmatpush1.bf16.msra.mxu0 0
        %675 = vmatprep.subr.bf16.mxu0 0
        %676 = vmatpush1.bf16.msra.mxu0 0
        %677 = vmatprep.mubr.bf16.mxu0 0
        %678 = vmatmul.mubr.bf16.gmra.mrb[0].mxu0 %v586
        %v679 = vpop.f32.mrb[0].mxu0
        %v680 = vadd.f32 0.0, %v679
        %v681 = vpop.f32.mrb[0].mxu0
        %v682 = vpop.f32.mrb[0].mxu0
        %v683 = vadd.f32 0.0, %v682
        %v684 = vpop.f32.mrb[0].mxu0
        %685 = vdwg.mxu0
        %v686 = vld [vmem:[%s6] sm:$0x1]
        %v688 = vlaneseq
        %v689 = vshrl.u32 %v688, 7
        %v690 = vsub.s32 0, %v689
        %v691 = vrot.slane %v686, %v690
        %v693 = vadd.f32 %v564, %v691
        %v694 = vpack.c.bf16 %v693, %v693
        %695 = vst.msk [vmem:[#allocation3] sm:$0xf] %vm501, %v694
        %v696 = vld [vmem:[%s7] sm:$0x1]
        %v698 = vlaneseq
        %v699 = vshrl.u32 %v698, 7
        %v700 = vsub.s32 0, %v699
        %v701 = vrot.slane %v696, %v700
        %v703 = vadd.f32 %v564, %v701
        %v704 = vpack.c.bf16 %v703, %v703
        %705 = vst.msk [vmem:[#allocation4] sm:$0xf] %vm501, %v704
        %v706 = vpack.c.bf16 %v626, %v623
        %707 = vst.msk [vmem:[#allocation5] sm:$0xff] %vm525, %v706
        %v708 = vpack.c.bf16 %v683, %v680
        %709 = vst.msk [vmem:[#allocation6] sm:$0xff] %vm525, %v708
        %v710 = vlaneseq
        %v711 = vshrl.u32 %v710, 7
        %v712 = vlaneseq
        %v713 = vand.u32 %v712, 127
        %v714 = vadd.s32 %v711, 8
        %vm715 = vcmp.le.s32.totalorder %v713, %v714
        %v716 = vld [vmem:[#allocation3] sm:$0xf]
        %v717 = vld [vmem:[#allocation4] sm:$0xf]
        %v718 = vld [vmem:[#allocation5] sm:$0xff]
        %v719 = vld [vmem:[#allocation6] sm:$0xff]
        %v720 = vld [vmem:[#allocation14] sm:$0xf]
        %v721 = vld [vmem:[#allocation14 + $0x4] sm:$0xf]
        %v724 = vunpack.c.l.b16 %v720
        %v725 = vunpack.c.l.b16 %v721
        %v726 = vpack.c.b16 %v725, %v724
        %vm727 = vcmask 130048
        %v729 = vsel %vm727, %v717, 0
        %v732 = vsel %vm727, %v726, 0
        %734 = vmatprep.subr.bf16.mxu0 0
        %735 = vmatpush1.bf16.xpose.msra.mxu0 %v732
        %736 = vmatprep.subr.bf16.mxu0 0
        %737 = vmatpush1.bf16.xpose.msra.mxu0 0
        %738 = vmatprep.subr.bf16.mxu0 0
        %739 = vmatpush1.bf16.xpose.msra.mxu0 0
        %740 = vmatprep.subr.bf16.mxu0 0
        %741 = vmatpush1.bf16.xpose.msra.mxu0 0
        %742 = vmatprep.subr.bf16.mxu0 0
        %743 = vmatpush1.bf16.xpose.msra.mxu0 0
        %744 = vmatprep.subr.bf16.mxu0 0
        %745 = vmatpush1.bf16.xpose.msra.mxu0 0
        %746 = vmatprep.subr.bf16.mxu0 0
        %747 = vmatpush1.bf16.xpose.msra.mxu0 0
        %748 = vmatprep.subr.bf16.mxu0 0
        %749 = vmatpush1.bf16.xpose.msra.mxu0 0
        %750 = vmatprep.subr.bf16.mxu0 0
        %751 = vmatpush1.bf16.xpose.msra.mxu0 0
        %752 = vmatprep.subr.bf16.mxu0 0
        %753 = vmatpush1.bf16.xpose.msra.mxu0 0
        %754 = vmatprep.subr.bf16.mxu0 0
        %755 = vmatpush1.bf16.xpose.msra.mxu0 0
        %756 = vmatprep.subr.bf16.mxu0 0
        %757 = vmatpush1.bf16.xpose.msra.mxu0 0
        %758 = vmatprep.subr.bf16.mxu0 0
        %759 = vmatpush1.bf16.xpose.msra.mxu0 0
        %760 = vmatprep.subr.bf16.mxu0 0
        %761 = vmatpush1.bf16.xpose.msra.mxu0 0
        %762 = vmatprep.subr.bf16.mxu0 0
        %763 = vmatpush1.bf16.xpose.msra.mxu0 0
        %764 = vmatprep.subr.bf16.mxu0 0
        %765 = vmatpush1.bf16.xpose.msra.mxu0 0
        %766 = vmatprep.mubr.bf16.mxu0 0
        %767 = vmatmul.mubr.bf16.gmra.mrb[0].mxu0 %v729
        %v768 = vpop.f32.mrb[0].mxu0
        %v769 = vadd.f32 0.0, %v768
        %v770 = vpop.f32.mrb[0].mxu0
        %v771 = vpop.f32.mrb[0].mxu0
        %v772 = vpop.f32.mrb[0].mxu0
        %773 = vdwg.mxu0
        %vm774 = vcmask 122880
        %775 = vst.msk [vmem:[#allocation8] sm:$0x1] %vm774, %v769
        %777 = vrot.lane.b32.xlu0 %v769, 1
        %v778 = vpop.permute.xlu0 %777
        %vm780 = vcmask 132105
        %781 = vst.msk [vmem:[#allocation8] sm:$0x2] %vm780, %v778
        %782 = vrot.lane.b32.xlu0 %v769, 2
        %v783 = vpop.permute.xlu0 %782
        %vm785 = vcmask 141330
        %786 = vst.msk [vmem:[#allocation8] sm:$0x4] %vm785, %v783
        %787 = vrot.lane.b32.xlu0 %v769, 3
        %v788 = vpop.permute.xlu0 %787
        %vm790 = vcmask 150555
        %791 = vst.msk [vmem:[#allocation8] sm:$0x8] %vm790, %v788
        %792 = vrot.lane.b32.xlu0 %v769, 4
        %v793 = vpop.permute.xlu0 %792
        %vm795 = vcmask 159780
        %796 = vst.msk [vmem:[#allocation8] sm:$0x10] %vm795, %v793
        %797 = vrot.lane.b32.xlu0 %v769, 5
        %v798 = vpop.permute.xlu0 %797
        %vm800 = vcmask 169005
        %801 = vst.msk [vmem:[#allocation8] sm:$0x20] %vm800, %v798
        %802 = vrot.lane.b32.xlu0 %v769, 6
        %v803 = vpop.permute.xlu0 %802
        %vm805 = vcmask 178230
        %806 = vst.msk [vmem:[#allocation8] sm:$0x40] %vm805, %v803
        %807 = vrot.lane.b32.xlu0 %v769, 7
        %v808 = vpop.permute.xlu0 %807
        %vm810 = vcmask 187455
        %811 = vst.msk [vmem:[#allocation8] sm:$0x80] %vm810, %v808
        %v812 = vld [vmem:[#allocation8] sm:$0xff]
        %814 = vrot.lane.b32.xlu0 %v812, 121
        %v815 = vpop.permute.xlu0 %814
        %v818 = vsel %vm727, %v716, 0
        %v821 = vsel %vm727, %v718, 0
        %823 = vmatprep.subr.bf16.mxu0 0
        %824 = vmatpush1.bf16.xpose.msra.mxu0 %v821
        %825 = vmatprep.subr.bf16.mxu0 0
        %826 = vmatpush1.bf16.xpose.msra.mxu0 0
        %827 = vmatprep.subr.bf16.mxu0 0
        %828 = vmatpush1.bf16.xpose.msra.mxu0 0
        %829 = vmatprep.subr.bf16.mxu0 0
        %830 = vmatpush1.bf16.xpose.msra.mxu0 0
        %831 = vmatprep.subr.bf16.mxu0 0
        %832 = vmatpush1.bf16.xpose.msra.mxu0 0
        %833 = vmatprep.subr.bf16.mxu0 0
        %834 = vmatpush1.bf16.xpose.msra.mxu0 0
        %835 = vmatprep.subr.bf16.mxu0 0
        %836 = vmatpush1.bf16.xpose.msra.mxu0 0
        %837 = vmatprep.subr.bf16.mxu0 0
        %838 = vmatpush1.bf16.xpose.msra.mxu0 0
        %839 = vmatprep.subr.bf16.mxu0 0
        %840 = vmatpush1.bf16.xpose.msra.mxu0 0
        %841 = vmatprep.subr.bf16.mxu0 0
        %842 = vmatpush1.bf16.xpose.msra.mxu0 0
        %843 = vmatprep.subr.bf16.mxu0 0
        %844 = vmatpush1.bf16.xpose.msra.mxu0 0
        %845 = vmatprep.subr.bf16.mxu0 0
        %846 = vmatpush1.bf16.xpose.msra.mxu0 0
        %847 = vmatprep.subr.bf16.mxu0 0
        %848 = vmatpush1.bf16.xpose.msra.mxu0 0
        %849 = vmatprep.subr.bf16.mxu0 0
        %850 = vmatpush1.bf16.xpose.msra.mxu0 0
        %851 = vmatprep.subr.bf16.mxu0 0
        %852 = vmatpush1.bf16.xpose.msra.mxu0 0
        %853 = vmatprep.subr.bf16.mxu0 0
        %854 = vmatpush1.bf16.xpose.msra.mxu0 0
        %855 = vmatprep.mubr.bf16.mxu0 0
        %856 = vmatmul.mubr.bf16.gmra.mrb[0].mxu0 %v818
        %v857 = vpop.f32.mrb[0].mxu0
        %v858 = vadd.f32 %v815, %v857
        %v859 = vpop.f32.mrb[0].mxu0
        %v860 = vpop.f32.mrb[0].mxu0
        %v861 = vpop.f32.mrb[0].mxu0
        %862 = vdwg.mxu0
        %v863 = vmul.f32 %v858, 0.25
        %v864 = vsel %vm715, %v863, -1e+30
        %v865 = vsel %vm727, %v864, -inf
        %866 = vmax.xlane.f32.xlu0 %v865
        %v867 = vpop.xlane.xlu0 %866
        %v868 = vsub.f32 %v864, %v867
        %v869 = vmul.f32 %v868, 1.442695
        %v870 = vpow.pop %v869
        %v871 = vsel %vm727, %v870, 0.0
        %872 = vadd.xlane.f32.xlu0 %v871
        %v873 = vpop.xlane.xlu0 %872
        %v874 = vrcp.pop %v873
        %v875 = vmul.f32 %v870, %v874
        %v876 = vpack.c.bf16 %v875, %v875
        %v878 = vsel %vm727, %v876, 0
        %880 = vmatprep.subr.bf16.mxu0 0
        %881 = vmatpush1.bf16.msra.mxu0 %v719
        %882 = vmatprep.subr.bf16.mxu0 0
        %883 = vmatpush1.bf16.msra.mxu0 0
        %884 = vmatprep.subr.bf16.mxu0 0
        %885 = vmatpush1.bf16.msra.mxu0 0
        %886 = vmatprep.subr.bf16.mxu0 0
        %887 = vmatpush1.bf16.msra.mxu0 0
        %888 = vmatprep.subr.bf16.mxu0 0
        %889 = vmatpush1.bf16.msra.mxu0 0
        %890 = vmatprep.subr.bf16.mxu0 0
        %891 = vmatpush1.bf16.msra.mxu0 0
        %892 = vmatprep.subr.bf16.mxu0 0
        %893 = vmatpush1.bf16.msra.mxu0 0
        %894 = vmatprep.subr.bf16.mxu0 0
        %895 = vmatpush1.bf16.msra.mxu0 0
        %896 = vmatprep.subr.bf16.mxu0 0
        %897 = vmatpush1.bf16.msra.mxu0 0
        %898 = vmatprep.subr.bf16.mxu0 0
        %899 = vmatpush1.bf16.msra.mxu0 0
        %900 = vmatprep.subr.bf16.mxu0 0
        %901 = vmatpush1.bf16.msra.mxu0 0
        %902 = vmatprep.subr.bf16.mxu0 0
        %903 = vmatpush1.bf16.msra.mxu0 0
        %904 = vmatprep.subr.bf16.mxu0 0
        %905 = vmatpush1.bf16.msra.mxu0 0
        %906 = vmatprep.subr.bf16.mxu0 0
        %907 = vmatpush1.bf16.msra.mxu0 0
        %908 = vmatprep.subr.bf16.mxu0 0
        %909 = vmatpush1.bf16.msra.mxu0 0
        %910 = vmatprep.subr.bf16.mxu0 0
        %911 = vmatpush1.bf16.msra.mxu0 0
        %912 = vmatprep.mubr.bf16.mxu0 0
        %913 = vmatmul.mubr.bf16.gmra.mrb[0].mxu0 %v878
        %v914 = vpop.f32.mrb[0].mxu0
        %v915 = vadd.f32 0.0, %v914
        %v916 = vpop.f32.mrb[0].mxu0
        %v917 = vpop.f32.mrb[0].mxu0
        %v918 = vpop.f32.mrb[0].mxu0
        %919 = vdwg.mxu0
        %v920 = vpack.c.bf16 %v915, %v915
        %vm921 = vcmask 125952
        %922 = vst.msk [vmem:[#allocation7] sm:$0xf] %vm921, %v920
        %v923 = vld [vmem:[#allocation3] sm:$0xf]
        %v924 = vld [vmem:[#allocation4] sm:$0xf]
        %v925 = vld [vmem:[#allocation5] sm:$0xff]
        %v926 = vld [vmem:[#allocation6] sm:$0xff]
        %v927 = vld [vmem:[#allocation14] sm:$0xf]
        %v928 = vld [vmem:[#allocation14 + $0x4] sm:$0xf]
        %v930 = vunpack.c.l.b16 %v924
        %v931 = vpack.c.b16 %v930, %v930
        %932 = vrot.lane.b32.xlu0 %v931, 112
        %v933 = vpop.permute.xlu0 %932
        %v936 = vunpack.c.l.b16 %v927
        %v937 = vunpack.c.l.b16 %v928
        %v938 = vpack.c.b16 %v937, %v936
        %939 = vrot.lane.b32.xlu0 %v938, 112
        %v940 = vpop.permute.xlu0 %939
        %v942 = vsel %vm727, %v933, 0
        %v945 = vsel %vm727, %v940, 0
        %947 = vmatprep.subr.bf16.mxu0 0
        %948 = vmatpush1.bf16.xpose.msra.mxu0 %v945
        %949 = vmatprep.subr.bf16.mxu0 0
        %950 = vmatpush1.bf16.xpose.msra.mxu0 0
        %951 = vmatprep.subr.bf16.mxu0 0
        %952 = vmatpush1.bf16.xpose.msra.mxu0 0
        %953 = vmatprep.subr.bf16.mxu0 0
        %954 = vmatpush1.bf16.xpose.msra.mxu0 0
        %955 = vmatprep.subr.bf16.mxu0 0
        %956 = vmatpush1.bf16.xpose.msra.mxu0 0
        %957 = vmatprep.subr.bf16.mxu0 0
        %958 = vmatpush1.bf16.xpose.msra.mxu0 0
        %959 = vmatprep.subr.bf16.mxu0 0
        %960 = vmatpush1.bf16.xpose.msra.mxu0 0
        %961 = vmatprep.subr.bf16.mxu0 0
        %962 = vmatpush1.bf16.xpose.msra.mxu0 0
        %963 = vmatprep.subr.bf16.mxu0 0
        %964 = vmatpush1.bf16.xpose.msra.mxu0 0
        %965 = vmatprep.subr.bf16.mxu0 0
        %966 = vmatpush1.bf16.xpose.msra.mxu0 0
        %967 = vmatprep.subr.bf16.mxu0 0
        %968 = vmatpush1.bf16.xpose.msra.mxu0 0
        %969 = vmatprep.subr.bf16.mxu0 0
        %970 = vmatpush1.bf16.xpose.msra.mxu0 0
        %971 = vmatprep.subr.bf16.mxu0 0
        %972 = vmatpush1.bf16.xpose.msra.mxu0 0
        %973 = vmatprep.subr.bf16.mxu0 0
        %974 = vmatpush1.bf16.xpose.msra.mxu0 0
        %975 = vmatprep.subr.bf16.mxu0 0
        %976 = vmatpush1.bf16.xpose.msra.mxu0 0
        %977 = vmatprep.subr.bf16.mxu0 0
        %978 = vmatpush1.bf16.xpose.msra.mxu0 0
        %979 = vmatprep.mubr.bf16.mxu0 0
        %980 = vmatmul.mubr.bf16.gmra.mrb[0].mxu0 %v942
        %v981 = vpop.f32.mrb[0].mxu0
        %v982 = vadd.f32 0.0, %v981
        %v983 = vpop.f32.mrb[0].mxu0
        %v984 = vpop.f32.mrb[0].mxu0
        %v985 = vpop.f32.mrb[0].mxu0
        %986 = vdwg.mxu0
        %987 = vst.msk [vmem:[#allocation8] sm:$0x1] %vm774, %v982
        %989 = vrot.lane.b32.xlu0 %v982, 1
        %v990 = vpop.permute.xlu0 %989
        %992 = vst.msk [vmem:[#allocation8] sm:$0x2] %vm780, %v990
        %993 = vrot.lane.b32.xlu0 %v982, 2
        %v994 = vpop.permute.xlu0 %993
        %996 = vst.msk [vmem:[#allocation8] sm:$0x4] %vm785, %v994
        %997 = vrot.lane.b32.xlu0 %v982, 3
        %v998 = vpop.permute.xlu0 %997
        %1000 = vst.msk [vmem:[#allocation8] sm:$0x8] %vm790, %v998
        %1001 = vrot.lane.b32.xlu0 %v982, 4
        %v1002 = vpop.permute.xlu0 %1001
        %1004 = vst.msk [vmem:[#allocation8] sm:$0x10] %vm795, %v1002
        %1005 = vrot.lane.b32.xlu0 %v982, 5
        %v1006 = vpop.permute.xlu0 %1005
        %1008 = vst.msk [vmem:[#allocation8] sm:$0x20] %vm800, %v1006
        %1009 = vrot.lane.b32.xlu0 %v982, 6
        %v1010 = vpop.permute.xlu0 %1009
        %1012 = vst.msk [vmem:[#allocation8] sm:$0x40] %vm805, %v1010
        %1013 = vrot.lane.b32.xlu0 %v982, 7
        %v1014 = vpop.permute.xlu0 %1013
        %1016 = vst.msk [vmem:[#allocation8] sm:$0x80] %vm810, %v1014
        %v1017 = vld [vmem:[#allocation8] sm:$0xff]
        %v1019 = vunpack.c.l.b16 %v923
        %v1020 = vpack.c.b16 %v1019, %v1019
        %1021 = vrot.lane.b32.xlu0 %v1020, 112
        %v1022 = vpop.permute.xlu0 %1021
        %1024 = vrot.lane.b32.xlu0 %v925, 112
        %v1025 = vpop.permute.xlu0 %1024
        %1027 = vrot.lane.b32.xlu0 %v1017, 121
        %v1028 = vpop.permute.xlu0 %1027
        %v1031 = vsel %vm727, %v1022, 0
        %v1034 = vsel %vm727, %v1025, 0
        %1036 = vmatprep.subr.bf16.mxu0 0
        %1037 = vmatpush1.bf16.xpose.msra.mxu0 %v1034
        %1038 = vmatprep.subr.bf16.mxu0 0
        %1039 = vmatpush1.bf16.xpose.msra.mxu0 0
        %1040 = vmatprep.subr.bf16.mxu0 0
        %1041 = vmatpush1.bf16.xpose.msra.mxu0 0
        %1042 = vmatprep.subr.bf16.mxu0 0
        %1043 = vmatpush1.bf16.xpose.msra.mxu0 0
        %1044 = vmatprep.subr.bf16.mxu0 0
        %1045 = vmatpush1.bf16.xpose.msra.mxu0 0
        %1046 = vmatprep.subr.bf16.mxu0 0
        %1047 = vmatpush1.bf16.xpose.msra.mxu0 0
        %1048 = vmatprep.subr.bf16.mxu0 0
        %1049 = vmatpush1.bf16.xpose.msra.mxu0 0
        %1050 = vmatprep.subr.bf16.mxu0 0
        %1051 = vmatpush1.bf16.xpose.msra.mxu0 0
        %1052 = vmatprep.subr.bf16.mxu0 0
        %1053 = vmatpush1.bf16.xpose.msra.mxu0 0
        %1054 = vmatprep.subr.bf16.mxu0 0
        %1055 = vmatpush1.bf16.xpose.msra.mxu0 0
        %1056 = vmatprep.subr.bf16.mxu0 0
        %1057 = vmatpush1.bf16.xpose.msra.mxu0 0
        %1058 = vmatprep.subr.bf16.mxu0 0
        %1059 = vmatpush1.bf16.xpose.msra.mxu0 0
        %1060 = vmatprep.subr.bf16.mxu0 0
        %1061 = vmatpush1.bf16.xpose.msra.mxu0 0
        %1062 = vmatprep.subr.bf16.mxu0 0
        %1063 = vmatpush1.bf16.xpose.msra.mxu0 0
        %1064 = vmatprep.subr.bf16.mxu0 0
        %1065 = vmatpush1.bf16.xpose.msra.mxu0 0
        %1066 = vmatprep.subr.bf16.mxu0 0
        %1067 = vmatpush1.bf16.xpose.msra.mxu0 0
        %1068 = vmatprep.mubr.bf16.mxu0 0
        %1069 = vmatmul.mubr.bf16.gmra.mrb[0].mxu0 %v1031
        %v1070 = vpop.f32.mrb[0].mxu0
        %v1071 = vadd.f32 %v1028, %v1070
        %v1072 = vpop.f32.mrb[0].mxu0
        %v1073 = vpop.f32.mrb[0].mxu0
        %v1074 = vpop.f32.mrb[0].mxu0
        %1075 = vdwg.mxu0
        %v1076 = vmul.f32 %v1071, 0.25
        %v1077 = vsel %vm715, %v1076, -1e+30
        %v1078 = vsel %vm727, %v1077, -inf
        %1079 = vmax.xlane.f32.xlu0 %v1078
        %v1080 = vpop.xlane.xlu0 %1079
        %v1081 = vsub.f32 %v1077, %v1080
        %v1082 = vmul.f32 %v1081, 1.442695
        %v1083 = vpow.pop %v1082
        %v1084 = vsel %vm727, %v1083, 0.0
        %1085 = vadd.xlane.f32.xlu0 %v1084
        %v1086 = vpop.xlane.xlu0 %1085
        %v1087 = vrcp.pop %v1086
        %v1088 = vmul.f32 %v1083, %v1087
        %v1089 = vpack.c.bf16 %v1088, %v1088
        %1091 = vrot.lane.b32.xlu0 %v926, 112
        %v1092 = vpop.permute.xlu0 %1091
        %v1095 = vsel %vm727, %v1089, 0
        %1097 = vmatprep.subr.bf16.mxu0 0
        %1098 = vmatpush1.bf16.msra.mxu0 %v1092
        %1099 = vmatprep.subr.bf16.mxu0 0
        %1100 = vmatpush1.bf16.msra.mxu0 0
        %1101 = vmatprep.subr.bf16.mxu0 0
        %1102 = vmatpush1.bf16.msra.mxu0 0
        %1103 = vmatprep.subr.bf16.mxu0 0
        %1104 = vmatpush1.bf16.msra.mxu0 0
        %1105 = vmatprep.subr.bf16.mxu0 0
        %1106 = vmatpush1.bf16.msra.mxu0 0
        %1107 = vmatprep.subr.bf16.mxu0 0
        %1108 = vmatpush1.bf16.msra.mxu0 0
        %1109 = vmatprep.subr.bf16.mxu0 0
        %1110 = vmatpush1.bf16.msra.mxu0 0
        %1111 = vmatprep.subr.bf16.mxu0 0
        %1112 = vmatpush1.bf16.msra.mxu0 0
        %1113 = vmatprep.subr.bf16.mxu0 0
        %1114 = vmatpush1.bf16.msra.mxu0 0
        %1115 = vmatprep.subr.bf16.mxu0 0
        %1116 = vmatpush1.bf16.msra.mxu0 0
        %1117 = vmatprep.subr.bf16.mxu0 0
        %1118 = vmatpush1.bf16.msra.mxu0 0
        %1119 = vmatprep.subr.bf16.mxu0 0
        %1120 = vmatpush1.bf16.msra.mxu0 0
        %1121 = vmatprep.subr.bf16.mxu0 0
        %1122 = vmatpush1.bf16.msra.mxu0 0
        %1123 = vmatprep.subr.bf16.mxu0 0
        %1124 = vmatpush1.bf16.msra.mxu0 0
        %1125 = vmatprep.subr.bf16.mxu0 0
        %1126 = vmatpush1.bf16.msra.mxu0 0
        %1127 = vmatprep.subr.bf16.mxu0 0
        %1128 = vmatpush1.bf16.msra.mxu0 0
        %1129 = vmatprep.mubr.bf16.mxu0 0
        %1130 = vmatmul.mubr.bf16.gmra.mrb[0].mxu0 %v1095
        %v1131 = vpop.f32.mrb[0].mxu0
        %v1132 = vadd.f32 0.0, %v1131
        %v1133 = vpop.f32.mrb[0].mxu0
        %v1134 = vpop.f32.mrb[0].mxu0
        %v1135 = vpop.f32.mrb[0].mxu0
        %1136 = vdwg.mxu0
        %v1137 = vpack.c.bf16 %v1132, %v1132
        %v1139 = vunpack.c.l.b16 %v1137
        %v1140 = vpack.c.b16 %v1139, %v1139
        %1141 = vrot.lane.b32.xlu0 %v1140, 16
        %v1142 = vpop.permute.xlu0 %1141
        %vm1144 = vcmask 257152
        %1145 = vst.msk [vmem:[#allocation7] sm:$0xf] %vm1144, %v1142
        %v1146 = vld [vmem:[#allocation7] sm:$0xf]
        %v1147 = vld [vmem:[#allocation18] sm:$0xf]
        %v1148 = vld [vmem:[#allocation18 + $0x4] sm:$0xf]
        %v1149 = vld [vmem:[#allocation18 + $0x8] sm:$0xf]
        %v1150 = vld [vmem:[#allocation18 + $0xc] sm:$0xf]
        %v1155 = vunpack.c.l.b16 %v1147
        %v1156 = vunpack.c.l.b16 %v1148
        %v1157 = vunpack.c.l.b16 %v1149
        %v1158 = vunpack.c.l.b16 %v1150
        %v1159 = vpack.c.b16 %v1156, %v1155
        %v1160 = vpack.c.b16 %v1158, %v1157
        %v1164 = vsel %vm525, %v1146, 0
        %1166 = vmatprep.subr.bf16.mxu0 0
        %1167 = vmatpush1.bf16.msra.mxu0 %v1159
        %1168 = vmatprep.subr.bf16.mxu0 0
        %1169 = vmatpush1.bf16.msra.mxu0 %v1160
        %1170 = vmatprep.subr.bf16.mxu0 0
        %1171 = vmatpush1.bf16.msra.mxu0 0
        %1172 = vmatprep.subr.bf16.mxu0 0
        %1173 = vmatpush1.bf16.msra.mxu0 0
        %1174 = vmatprep.subr.bf16.mxu0 0
        %1175 = vmatpush1.bf16.msra.mxu0 0
        %1176 = vmatprep.subr.bf16.mxu0 0
        %1177 = vmatpush1.bf16.msra.mxu0 0
        %1178 = vmatprep.subr.bf16.mxu0 0
        %1179 = vmatpush1.bf16.msra.mxu0 0
        %1180 = vmatprep.subr.bf16.mxu0 0
        %1181 = vmatpush1.bf16.msra.mxu0 0
        %1182 = vmatprep.subr.bf16.mxu0 0
        %1183 = vmatpush1.bf16.msra.mxu0 0
        %1184 = vmatprep.subr.bf16.mxu0 0
        %1185 = vmatpush1.bf16.msra.mxu0 0
        %1186 = vmatprep.subr.bf16.mxu0 0
        %1187 = vmatpush1.bf16.msra.mxu0 0
        %1188 = vmatprep.subr.bf16.mxu0 0
        %1189 = vmatpush1.bf16.msra.mxu0 0
        %1190 = vmatprep.subr.bf16.mxu0 0
        %1191 = vmatpush1.bf16.msra.mxu0 0
        %1192 = vmatprep.subr.bf16.mxu0 0
        %1193 = vmatpush1.bf16.msra.mxu0 0
        %1194 = vmatprep.subr.bf16.mxu0 0
        %1195 = vmatpush1.bf16.msra.mxu0 0
        %1196 = vmatprep.subr.bf16.mxu0 0
        %1197 = vmatpush1.bf16.msra.mxu0 0
        %1198 = vmatprep.mubr.bf16.mxu0 0
        %1199 = vmatmul.mubr.bf16.gmra.mrb[0].mxu0 %v1164
        %v1200 = vpop.f32.mrb[0].mxu0
        %v1201 = vadd.f32 %v498, %v1200
        %v1202 = vpop.f32.mrb[0].mxu0
        %v1203 = vpop.f32.mrb[0].mxu0
        %v1204 = vpop.f32.mrb[0].mxu0
        %1205 = vdwg.mxu0
        %v1206 = vsel %vm525, %v1201, 0.0
        %1207 = vadd.xlane.f32.xlu0 %v1206
        %v1208 = vpop.xlane.xlu0 %1207
        %v1209 = vrcp.pop 32.0
        %v1210 = vmul.f32 %v1208, %v1209
        %v1211 = vsub.f32 %v1201, %v1210
        %v1212 = vmul.f32 %v1211, %v1211
        %v1213 = vsel %vm525, %v1212, 0.0
        %1214 = vadd.xlane.f32.xlu0 %v1213
        %v1215 = vpop.xlane.xlu0 %1214
        %v1216 = vmul.f32 %v1215, %v1209
        %v1217 = vadd.f32 %v1216, 1e-05
        %v1218 = vrsqrt.pop %v1217
        %v1219 = vmul.f32 %v1211, %v1218
        %v1220 = vld [vmem:[%s9] sm:$0x1]
        %v1222 = vlaneseq
        %v1223 = vshrl.u32 %v1222, 7
        %v1224 = vsub.s32 0, %v1223
        %v1225 = vrot.slane %v1220, %v1224
        %v1227 = vmul.f32 %v1219, %v1225
        %v1228 = vld [vmem:[%s10] sm:$0x1]
        %v1230 = vlaneseq
        %v1231 = vshrl.u32 %v1230, 7
        %v1232 = vsub.s32 0, %v1231
        %v1233 = vrot.slane %v1228, %v1232
        %v1235 = vadd.f32 %v1227, %v1233
        %1236 = vst.msk [vmem:[%s496] sm:$0xff] %vm525, %v1235
        %s1237 = sand.u32 %s282, 1
        %s1238 = scalar_lea.sflag [#allocation11], %s1237
        %s1239 = sand.u32 %s282, 1
        %s1240 = smul.addr %s1239, 8
        %s1241 = scalar_lea.vmem [#allocation20], %s1240
        // Predicated region
        $region89: #{tpu_custom_call.1} parent=63 // pred_check
          %p1242 = pneg %p292
        $region90: #{tpu_custom_call.1} parent=63 // pred_check_branch
          %1244 = sbr.rel (%p1242) target = $region92
        $region91: #{tpu_custom_call.1} parent=63 // pred_region
          %s1246 = ssub.s32 128, 128
          %1247 = vsyncadd %s1238, %s1246
          %s1248 = smul.addr %s33, 128
          %s1249 = scalar_lea.hbm %s11, %s1248
          %s1251 = sshll.u32 %s1241, 4
          %s1252 = int_to_ptr.vmem [resolvable:$true] %s1251
          %1254 = dma.vmem_to_hbm [thread:$0]  %s1252, 128, %s1249, %s1238
        $region92: #{tpu_custom_call.1} parent=63 // pred_fallthru
          _
      $region64: #{tpu_custom_call.1} parent=5 // pred_fallthru
        _
      %p1255 = scmp.le.s32.totalorder 2, %s28
      // Predicated region
      $region93: #{tpu_custom_call.1} parent=5 // pred_check
        %p1256 = pneg %p1255
      $region94: #{tpu_custom_call.1} parent=5 // pred_check_branch
        %1258 = sbr.rel (%p1256) target = $region96
      $region95: #{tpu_custom_call.1} parent=5 // pred_region
        %s1259 = ssub.s32 %s28, 2
        // Predicated region
        $region97: #{tpu_custom_call.1} parent=95 // pred_check
          %p1260 = pneg %p298
        $region98: #{tpu_custom_call.1} parent=95 // pred_check_branch
          %1262 = sbr.rel (%p1260) target = $region100
        $region99: #{tpu_custom_call.1} parent=95 // pred_region
          %s1263 = sand.u32 %s283, 1
          %s1264 = scalar_lea.sflag [#allocation11], %s1263
          %s1265 = sand.u32 %s283, 1
          %s1266 = smul.addr %s1265, 8
          %s1267 = scalar_lea.vmem [#allocation20], %s1266
          %1268 = dma.done %s1264, 128
        $region100: #{tpu_custom_call.1} parent=95 // pred_fallthru
          _
      $region96: #{tpu_custom_call.1} parent=5 // pred_fallthru
        _
    $region6: #{tpu_custom_call.1} parent=1 // loop_footer
      %s32 = sadd.s32 1, %s28
    $region7: #{tpu_custom_call.1} parent=1 // loop_footer_branch
      %27 = sbr.rel target = $region3
    $region8: #{tpu_custom_call.1} parent=1 // loop_exit
      _
    %1269 = vsyncpa [#allocation10], 1
    %s1270 = scalar_lea.sflag [#allocation10], 1
    %1271 = vsyncpa %s1270, 1
    %1272 = vsyncpa [#allocation13], 1
    %s1273 = scalar_lea.sflag [#allocation13], 1
    %1274 = vsyncpa %s1273, 1
    %1275 = vsyncpa [#allocation16], 1
    %1276 = vsyncpa [#allocation19], 1
    %1277 = vsyncpa [#allocation11], 1
    %s1278 = scalar_lea.sflag [#allocation11], 1
    %1279 = vsyncpa %s1278, 1

</llo_original>
